<compile_context>
chip_gen: v6e
topology: v6e:2x2x1
jax: 0.10.0
libtpu: 0.0.40
codegen_flags: <defaults>
</compile_context>

<pallas_src>
import functools

import jax
import jax.numpy as jnp
import numpy as np
from jax.experimental import pallas as pl
from jax.experimental.pallas import tpu as pltpu

KERNEL_SIZE = 4
STRIDE = 2
PADDING = 1
BN_EPS = 1e-5


# -----------------------------------------------------------------------------
# Pallas kernel 1: strided Conv2d for one image + per-image BN partial stats
# -----------------------------------------------------------------------------
def _conv_stats_kernel(*refs, K, s, Hout, Wout, add_bias):
    """Refs (add_bias=True):  x, w, b, y, stats
       Refs (add_bias=False): x, w,    y, stats
       x:     (s*s, Hq, Wq, Cin)   stride-phase split, padded input
       w:     (K*K*Cin, Cout)      weight, rows ordered (kh, kw, ci)
       b:     (1, Cout)            conv bias (fp32)
       y:     (1, Hout*Wout, Cout) conv output (fp32)
       stats: (1, 2, Cout)         per-image [sum, sum_of_squares]
    """
    if add_bias:
        x_ref, w_ref, b_ref, y_ref, stats_ref = refs
    else:
        x_ref, w_ref, y_ref, stats_ref = refs
    cin = x_ref.shape[-1]
    # im2col: every tap is a contiguous slice of a phase plane; fold all taps
    # into the contraction dimension and issue a single MXU matmul.
    cols = []
    for kh in range(K):
        qh = kh // s
        for kw in range(K):
            qw = kw // s
            phase = (kh % s) * s + (kw % s)
            patch = x_ref[phase, qh:qh + Hout, qw:qw + Wout, :]
            cols.append(patch.reshape(Hout * Wout, cin))
    patches = jnp.concatenate(cols, axis=-1)                 # (HW, K*K*Cin)
    y = jnp.dot(patches, w_ref[...], preferred_element_type=jnp.float32)
    if add_bias:
        y = y + b_ref[...]
    y_ref[0] = y
    ssum = jnp.sum(y, axis=0, keepdims=True)                 # (1, Cout)
    ssq = jnp.sum(y * y, axis=0, keepdims=True)              # (1, Cout)
    stats_ref[0] = jnp.concatenate([ssum, ssq], axis=0)      # (2, Cout)


def _conv_block(a_nhwc, w_flat, b, *, K, s, p, normalize, compute_dtype):
    """Conv part of one ConvBlock. Returns (y, stats, Hout, Wout)."""
    N, H, W, Cin = a_nhwc.shape
    Cout = w_flat.shape[1]
    Hout = (H + 2 * p - K) // s + 1
    Wout = (W + 2 * p - K) // s + 1
    # padded size: big enough for all taps and divisible by the stride
    Hq = max(-(-(H + 2 * p) // s), (K - 1) // s + Hout)
    Wq = max(-(-(W + 2 * p) // s), (K - 1) // s + Wout)
    a_pad = jnp.pad(a_nhwc, ((0, 0), (p, Hq * s - H - p),
                             (p, Wq * s - W - p), (0, 0)))
    # stride-phase (sub-pixel) split:
    #   x_ps[n*s*s + ph*s + pw, a, b, c] == a_pad[n, a*s + ph, b*s + pw, c]
    x_ps = a_pad.reshape(N, Hq, s, Wq, s, Cin).transpose(0, 2, 4, 1, 3, 5)
    x_ps = x_ps.reshape(N * s * s, Hq, Wq, Cin).astype(compute_dtype)

    add_bias = not normalize
    kernel = functools.partial(_conv_stats_kernel, K=K, s=s, Hout=Hout,
                               Wout=Wout, add_bias=add_bias)
    in_specs = [
        pl.BlockSpec((s * s, Hq, Wq, Cin), lambda n: (n, 0, 0, 0)),
        pl.BlockSpec((w_flat.shape[0], Cout), lambda n: (0, 0)),
    ]
    args = [x_ps, w_flat]
    if add_bias:
        in_specs.append(pl.BlockSpec((1, Cout), lambda n: (0, 0)))
        args.append(b.reshape(1, Cout).astype(jnp.float32))

    y, stats = pl.pallas_call(
        kernel,
        out_shape=(
            jax.ShapeDtypeStruct((N, Hout * Wout, Cout), jnp.float32),
            jax.ShapeDtypeStruct((N, 2, Cout), jnp.float32),
        ),
        grid_spec=pltpu.PrefetchScalarGridSpec(
            num_scalar_prefetch=0,
            grid=(N,),
            in_specs=in_specs,
            out_specs=[
                pl.BlockSpec((1, Hout * Wout, Cout), lambda n: (n, 0, 0)),
                pl.BlockSpec((1, 2, Cout), lambda n: (n, 0, 0)),
            ],
        ),
        # Per-image partial stats => no resident accumulator => the batch axis
        # can be sharded across TensorCores.
        compiler_params=pltpu.CompilerParams(
            dimension_semantics=("parallel",)),
    )(*args)
    return y, stats, Hout, Wout


# -----------------------------------------------------------------------------
# Pallas kernel 2: fused [last-block BN + ReLU] -> flatten -> fc -> ReLU ->
#                  [fc_mu | fc_logvar] as a single concatenated projection
# -----------------------------------------------------------------------------
def _head_kernel(h_ref, sc_ref, sh_ref, wfc_ref, bfc_ref, wml_ref, bml_ref,
                 out_ref):
    h = jnp.maximum(h_ref[...] * sc_ref[...] + sh_ref[...], 0.0)   # BN + ReLU
    h = h.astype(wfc_ref.dtype)
    z = jnp.dot(h, wfc_ref[...], preferred_element_type=jnp.float32)
    z = jnp.maximum(z + bfc_ref[...], 0.0).astype(wml_ref.dtype)   # fc + ReLU
    out_ref[...] = jnp.dot(z, wml_ref[...],
                           preferred_element_type=jnp.float32) + bml_ref[...]


def _encoder_head(y_last, scale, shift, HW, wfc_flat, bfc, wmu_t, bmu,
                  wlv_t, blv, *, compute_dtype):
    N, _, C = y_last.shape
    D = HW * C
    F = wfc_flat.shape[1]
    L = wmu_t.shape[1]
    h_flat = y_last.reshape(N, D)                    # lane-dense (N, H*W*C)
    sc = jnp.tile(scale, HW).reshape(1, D)           # per-channel, channel-fastest
    sh = jnp.tile(shift, HW).reshape(1, D)
    # Single MXU dot for [mu | logvar]: concatenate the two output projections.
    wml = jnp.concatenate([wmu_t, wlv_t], axis=1)            # (F, 2L)
    bml = jnp.concatenate([bmu, blv], axis=0).reshape(1, 2 * L)

    def full(shape):
        return pl.BlockSpec(shape, lambda i: (0,) * len(shape))

    out = pl.pallas_call(
        _head_kernel,
        out_shape=jax.ShapeDtypeStruct((N, 2 * L), jnp.float32),
        grid_spec=pltpu.PrefetchScalarGridSpec(
            num_scalar_prefetch=0,
            grid=(1,),
            in_specs=[full((N, D)), full((1, D)), full((1, D)),
                      full((D, F)), full((1, F)),
                      full((F, 2 * L)), full((1, 2 * L))],
            out_specs=full((N, 2 * L)),
        ),
        compiler_params=pltpu.CompilerParams(
            dimension_semantics=("arbitrary",)),
    )(h_flat, sc, sh,
      wfc_flat.astype(compute_dtype), bfc.reshape(1, F).astype(jnp.float32),
      wml.astype(compute_dtype), bml.astype(jnp.float32))
    return out[:, :L], out[:, L:]


# -----------------------------------------------------------------------------
# Full encoder forward
# -----------------------------------------------------------------------------
def _vae_encoder_forward(x_nchw, params, *, kernel_size=KERNEL_SIZE,
                         stride=STRIDE, padding=PADDING, normalize=True,
                         compute_dtype=jnp.bfloat16):
    """params:
        'conv'     : list of (w (Cout,Cin,K,K), b (Cout,), gamma (Cout,), beta (Cout,))
        'fc'       : (w (F, C*H*W) [torch NCHW-flatten order], b (F,))
        'fc_mu'    : (w (L, F), b (L,))
        'fc_logvar': (w (L, F), b (L,))
       Returns (mu, logvar).
    """
    K, s, p = kernel_size, stride, padding
    N = x_nchw.shape[0]
    a = jnp.transpose(x_nchw, (0, 2, 3, 1)).astype(jnp.float32)   # NHWC

    y = scale = shift = None
    Hout = Wout = Cout = None
    for li, (w, b, gamma, beta) in enumerate(params['conv']):
        if li > 0:
            # Previous block's BN(scale/shift)+ReLU epilogue: left to XLA so it
            # fuses with the pad / stride-phase relayout below (no standalone
            # elementwise pallas_call, no extra HBM round trip).
            a = jnp.maximum(y * scale + shift, 0.0).reshape(N, Hout, Wout, Cout)
        Cout = w.shape[0]
        # (Cout, Cin, K, K) -> (K*K*Cin, Cout), rows ordered (kh, kw, ci).
        # Conv2d is cross-correlation => no spatial flip.
        w_flat = jnp.transpose(w, (2, 3, 1, 0)).reshape(K * K * w.shape[1], Cout)
        y, stats, Hout, Wout = _conv_block(
            a, w_flat.astype(compute_dtype), b, K=K, s=s, p=p,
            normalize=normalize, compute_dtype=compute_dtype)
        if normalize:
            tot = jnp.sum(stats, axis=0)                       # (2, Cout)
            count = jnp.float32(N * Hout * Wout)
            mean = tot[0] / count
            # E[y^2] - E[y]^2 in fp32; clamp guards tiny negative round-off.
            var = jnp.maximum(tot[1] / count - mean * mean, 0.0)
            inv_std = jax.lax.rsqrt(var + BN_EPS)
            scale = gamma.astype(jnp.float32) * inv_std
            shift = beta.astype(jnp.float32) - mean * scale
            # TODO(synk): BatchNorm2d running_mean/running_var buffer updates
            # (stateful) are not modeled; the forward output is unaffected.
        else:
            # conv bias was added inside the kernel in this path
            scale = jnp.ones((Cout,), jnp.float32)
            shift = jnp.zeros((Cout,), jnp.float32)

    # fc weight: (F, C*H*W) in torch NCHW-flatten order -> (H*W*C, F) to match
    # our NHWC flatten (one-time weight permutation, no activation relayout).
    wfc, bfc = params['fc']
    F = wfc.shape[0]
    wfc_flat = wfc.reshape(F, Cout, Hout, Wout).transpose(2, 3, 1, 0)
    wfc_flat = wfc_flat.reshape(Hout * Wout * Cout, F)
    wmu, bmu = params['fc_mu']
    wlv, blv = params['fc_logvar']
    # TODO(synk): non-VAE head (is_vae=False -> return relu(fc(h)) only) is not
    # implemented; this follows the is_vae=True branch of VaeEncoder.forward.
    return _encoder_head(y, scale, shift, Hout * Wout, wfc_flat, bfc,
                         wmu.T, bmu, wlv.T, blv, compute_dtype=compute_dtype)


vae_encoder_forward = jax.jit(
    _vae_encoder_forward,
    static_argnames=("kernel_size", "stride", "padding", "normalize",
                     "compute_dtype"))


# -----------------------------------------------------------------------------
# float64 numpy reference (PyTorch semantics)
# -----------------------------------------------------------------------------
def reference_forward(x, conv_params, fc_p, mu_p, lv_p, K, s, p, normalize=True):
    h = np.asarray(x, np.float64)
    for (w, b, gamma, beta) in conv_params:
        w = np.asarray(w, np.float64)
        b = np.asarray(b, np.float64)
        gamma = np.asarray(gamma, np.float64)
        beta = np.asarray(beta, np.float64)
        N, Cin, H, W = h.shape
        Cout = w.shape[0]
        Hout = (H + 2 * p - K) // s + 1
        Wout = (W + 2 * p - K) // s + 1
        hp = np.pad(h, ((0, 0), (0, 0), (p, p), (p, p)))
        y = np.zeros((N, Cout, Hout, Wout))
        for i in range(Hout):
            for j in range(Wout):
                patch = hp[:, :, i * s:i * s + K, j * s:j * s + K]
                y[:, :, i, j] = np.einsum('ncuv,dcuv->nd', patch, w)
        y = y + b[None, :, None, None]
        if normalize:
            mean = y.mean(axis=(0, 2, 3), keepdims=True)
            var = y.var(axis=(0, 2, 3), keepdims=True)   # biased (training BN)
            y = (y - mean) / np.sqrt(var + BN_EPS)
            y = y * gamma[None, :, None, None] + beta[None, :, None, None]
        h = np.maximum(y, 0.0)
    hf = h.reshape(h.shape[0], -1)                       # NCHW flatten
    wfc, bfc = [np.asarray(t, np.float64) for t in fc_p]
    z = np.maximum(hf @ wfc.T + bfc, 0.0)
    wmu, bmu = [np.asarray(t, np.float64) for t in mu_p]
    wlv, blv = [np.asarray(t, np.float64) for t in lv_p]
    return z @ wmu.T + bmu, z @ wlv.T + blv


if __name__ == "__main__":
    K, s, p = KERNEL_SIZE, STRIDE, PADDING
    N, Cin, H, W = 2, 4, 16, 16
    conv_out_dim, out_dim_scale, n_blocks = 8, 2, 2
    latent_dim = 8

    key = jax.random.PRNGKey(0)

    def xavier(k, shape, fan_in, fan_out):
        bound = float(np.sqrt(6.0 / (fan_in + fan_out)))
        return jax.random.uniform(k, shape, jnp.float32, -bound, bound)

    conv_params = []
    cin, cout = Cin, conv_out_dim
    for _ in range(n_blocks):
        key, kw_, kb_, kg_, kbt_ = jax.random.split(key, 5)
        w = xavier(kw_, (cout, cin, K, K), cin * K * K, cout * K * K)
        # random bias / BN affine params to exercise the bias-cancellation and
        # scale/shift paths (module init would be b=0, gamma=1, beta=0).
        bconv = jax.random.uniform(kb_, (cout,), jnp.float32, -0.1, 0.1)
        gamma = jax.random.uniform(kg_, (cout,), jnp.float32, 0.5, 1.5)
        beta = jax.random.uniform(kbt_, (cout,), jnp.float32, -0.5, 0.5)
        conv_params.append((w, bconv, gamma, beta))
        cin, cout = cout, cout * out_dim_scale

    last_c = cin
    hout, wout = H, W
    for _ in range(n_blocks):
        hout = (hout + 2 * p - K) // s + 1
        wout = (wout + 2 * p - K) // s + 1
    flat_dim = last_c * hout * wout
    fc_out = last_c * out_dim_scale

    def linear_init(k, out_f, in_f):
        k1, k2 = jax.random.split(k)
        bound = float(1.0 / np.sqrt(in_f))
        return (jax.random.uniform(k1, (out_f, in_f), jnp.float32, -bound, bound),
                jax.random.uniform(k2, (out_f,), jnp.float32, -bound, bound))

    key, kfc, kmu, klv, kx = jax.random.split(key, 5)
    fc_p = linear_init(kfc, fc_out, flat_dim)
    mu_p = linear_init(kmu, latent_dim, fc_out)
    lv_p = linear_init(klv, latent_dim, fc_out)
    x = jax.random.normal(kx, (N, Cin, H, W), jnp.float32)

    params = {'conv': conv_params, 'fc': fc_p, 'fc_mu': mu_p, 'fc_logvar': lv_p}

    ref_mu, ref_lv = reference_forward(x, conv_params, fc_p, mu_p, lv_p, K, s, p)

    # fp32 compute path: tight check of the algorithm.
    mu32, lv32 = jax.block_until_ready(
        vae_encoder_forward(x, params, compute_dtype=jnp.float32))
    np.testing.assert_allclose(np.array(mu32), ref_mu, rtol=1e-3, atol=1e-3)
    np.testing.assert_allclose(np.array(lv32), ref_lv, rtol=1e-3, atol=1e-3)

    # bf16 matmul operands (default perf path): loose check.
    mubf, lvbf = jax.block_until_ready(
        vae_encoder_forward(x, params, compute_dtype=jnp.bfloat16))
    np.testing.assert_allclose(np.array(mubf), ref_mu, rtol=1.5e-1, atol=1.5e-1)
    np.testing.assert_allclose(np.array(lvbf), ref_lv, rtol=1.5e-1, atol=1.5e-1)

    print("KERNEL_OK")
</pallas_src>

<mosaic_0001>
module attributes {stable_mosaic.version = 11 : i64} {
  func.func @_conv_stats_kernel(%arg0: i32, %arg1: memref<4x9x9x4xf32, #tpu.memory_space<vmem>>, %arg2: memref<64x8xf32, #tpu.memory_space<vmem>>, %arg3: memref<1x64x8xf32, #tpu.memory_space<vmem>>, %arg4: memref<1x2x8xf32, #tpu.memory_space<vmem>>) attributes {dimension_semantics = [#tpu.dimension_semantics<parallel>], iteration_bounds = array<i64: 2>, scalar_prefetch = 0 : i64, scratch_operands = 0 : i64, tpu.core_type = #tpu.core_type<tc>, window_params = [{transform_indices = @transform_0, window_bounds = array<i64: 4, 9, 9, 4>}, {pipeline_mode = #tpu.pipeline_mode<synchronous>, transform_indices = @transform_1, window_bounds = array<i64: 64, 8>}, {transform_indices = @transform_2, window_bounds = array<i64: 1, 64, 8>}, {transform_indices = @transform_3, window_bounds = array<i64: 1, 2, 8>}]} {
    %c0 = arith.constant 0 : index
    %c0_0 = arith.constant 0 : index
    %c0_1 = arith.constant 0 : index
    %c0_2 = arith.constant 0 : index
    %0 = vector.load %arg1[%c0, %c0_0, %c0_1, %c0_2] : memref<4x9x9x4xf32, #tpu.memory_space<vmem>>, vector<1x8x8x4xf32>
    %1 = vector.shape_cast %0 : vector<1x8x8x4xf32> to vector<8x8x4xf32>
    %2 = vector.shape_cast %1 : vector<8x8x4xf32> to vector<64x4xf32>
    %c1 = arith.constant 1 : index
    %c0_3 = arith.constant 0 : index
    %c0_4 = arith.constant 0 : index
    %c0_5 = arith.constant 0 : index
    %3 = vector.load %arg1[%c1, %c0_3, %c0_4, %c0_5] : memref<4x9x9x4xf32, #tpu.memory_space<vmem>>, vector<1x8x8x4xf32>
    %4 = vector.shape_cast %3 : vector<1x8x8x4xf32> to vector<8x8x4xf32>
    %5 = vector.shape_cast %4 : vector<8x8x4xf32> to vector<64x4xf32>
    %c0_6 = arith.constant 0 : index
    %c0_7 = arith.constant 0 : index
    %c1_8 = arith.constant 1 : index
    %c0_9 = arith.constant 0 : index
    %6 = vector.load %arg1[%c0_6, %c0_7, %c1_8, %c0_9] : memref<4x9x9x4xf32, #tpu.memory_space<vmem>>, vector<1x8x8x4xf32>
    %7 = vector.shape_cast %6 : vector<1x8x8x4xf32> to vector<8x8x4xf32>
    %8 = vector.shape_cast %7 : vector<8x8x4xf32> to vector<64x4xf32>
    %c1_10 = arith.constant 1 : index
    %c0_11 = arith.constant 0 : index
    %c1_12 = arith.constant 1 : index
    %c0_13 = arith.constant 0 : index
    %9 = vector.load %arg1[%c1_10, %c0_11, %c1_12, %c0_13] : memref<4x9x9x4xf32, #tpu.memory_space<vmem>>, vector<1x8x8x4xf32>
    %10 = vector.shape_cast %9 : vector<1x8x8x4xf32> to vector<8x8x4xf32>
    %11 = vector.shape_cast %10 : vector<8x8x4xf32> to vector<64x4xf32>
    %c2 = arith.constant 2 : index
    %c0_14 = arith.constant 0 : index
    %c0_15 = arith.constant 0 : index
    %c0_16 = arith.constant 0 : index
    %12 = vector.load %arg1[%c2, %c0_14, %c0_15, %c0_16] : memref<4x9x9x4xf32, #tpu.memory_space<vmem>>, vector<1x8x8x4xf32>
    %13 = vector.shape_cast %12 : vector<1x8x8x4xf32> to vector<8x8x4xf32>
    %14 = vector.shape_cast %13 : vector<8x8x4xf32> to vector<64x4xf32>
    %c3 = arith.constant 3 : index
    %c0_17 = arith.constant 0 : index
    %c0_18 = arith.constant 0 : index
    %c0_19 = arith.constant 0 : index
    %15 = vector.load %arg1[%c3, %c0_17, %c0_18, %c0_19] : memref<4x9x9x4xf32, #tpu.memory_space<vmem>>, vector<1x8x8x4xf32>
    %16 = vector.shape_cast %15 : vector<1x8x8x4xf32> to vector<8x8x4xf32>
    %17 = vector.shape_cast %16 : vector<8x8x4xf32> to vector<64x4xf32>
    %c2_20 = arith.constant 2 : index
    %c0_21 = arith.constant 0 : index
    %c1_22 = arith.constant 1 : index
    %c0_23 = arith.constant 0 : index
    %18 = vector.load %arg1[%c2_20, %c0_21, %c1_22, %c0_23] : memref<4x9x9x4xf32, #tpu.memory_space<vmem>>, vector<1x8x8x4xf32>
    %19 = vector.shape_cast %18 : vector<1x8x8x4xf32> to vector<8x8x4xf32>
    %20 = vector.shape_cast %19 : vector<8x8x4xf32> to vector<64x4xf32>
    %c3_24 = arith.constant 3 : index
    %c0_25 = arith.constant 0 : index
    %c1_26 = arith.constant 1 : index
    %c0_27 = arith.constant 0 : index
    %21 = vector.load %arg1[%c3_24, %c0_25, %c1_26, %c0_27] : memref<4x9x9x4xf32, #tpu.memory_space<vmem>>, vector<1x8x8x4xf32>
    %22 = vector.shape_cast %21 : vector<1x8x8x4xf32> to vector<8x8x4xf32>
    %23 = vector.shape_cast %22 : vector<8x8x4xf32> to vector<64x4xf32>
    %c0_28 = arith.constant 0 : index
    %c1_29 = arith.constant 1 : index
    %c0_30 = arith.constant 0 : index
    %c0_31 = arith.constant 0 : index
    %24 = vector.load %arg1[%c0_28, %c1_29, %c0_30, %c0_31] : memref<4x9x9x4xf32, #tpu.memory_space<vmem>>, vector<1x8x8x4xf32>
    %25 = vector.shape_cast %24 : vector<1x8x8x4xf32> to vector<8x8x4xf32>
    %26 = vector.shape_cast %25 : vector<8x8x4xf32> to vector<64x4xf32>
    %c1_32 = arith.constant 1 : index
    %c1_33 = arith.constant 1 : index
    %c0_34 = arith.constant 0 : index
    %c0_35 = arith.constant 0 : index
    %27 = vector.load %arg1[%c1_32, %c1_33, %c0_34, %c0_35] : memref<4x9x9x4xf32, #tpu.memory_space<vmem>>, vector<1x8x8x4xf32>
    %28 = vector.shape_cast %27 : vector<1x8x8x4xf32> to vector<8x8x4xf32>
    %29 = vector.shape_cast %28 : vector<8x8x4xf32> to vector<64x4xf32>
    %c0_36 = arith.constant 0 : index
    %c1_37 = arith.constant 1 : index
    %c1_38 = arith.constant 1 : index
    %c0_39 = arith.constant 0 : index
    %30 = vector.load %arg1[%c0_36, %c1_37, %c1_38, %c0_39] : memref<4x9x9x4xf32, #tpu.memory_space<vmem>>, vector<1x8x8x4xf32>
    %31 = vector.shape_cast %30 : vector<1x8x8x4xf32> to vector<8x8x4xf32>
    %32 = vector.shape_cast %31 : vector<8x8x4xf32> to vector<64x4xf32>
    %c1_40 = arith.constant 1 : index
    %c1_41 = arith.constant 1 : index
    %c1_42 = arith.constant 1 : index
    %c0_43 = arith.constant 0 : index
    %33 = vector.load %arg1[%c1_40, %c1_41, %c1_42, %c0_43] : memref<4x9x9x4xf32, #tpu.memory_space<vmem>>, vector<1x8x8x4xf32>
    %34 = vector.shape_cast %33 : vector<1x8x8x4xf32> to vector<8x8x4xf32>
    %35 = vector.shape_cast %34 : vector<8x8x4xf32> to vector<64x4xf32>
    %c2_44 = arith.constant 2 : index
    %c1_45 = arith.constant 1 : index
    %c0_46 = arith.constant 0 : index
    %c0_47 = arith.constant 0 : index
    %36 = vector.load %arg1[%c2_44, %c1_45, %c0_46, %c0_47] : memref<4x9x9x4xf32, #tpu.memory_space<vmem>>, vector<1x8x8x4xf32>
    %37 = vector.shape_cast %36 : vector<1x8x8x4xf32> to vector<8x8x4xf32>
    %38 = vector.shape_cast %37 : vector<8x8x4xf32> to vector<64x4xf32>
    %c3_48 = arith.constant 3 : index
    %c1_49 = arith.constant 1 : index
    %c0_50 = arith.constant 0 : index
    %c0_51 = arith.constant 0 : index
    %39 = vector.load %arg1[%c3_48, %c1_49, %c0_50, %c0_51] : memref<4x9x9x4xf32, #tpu.memory_space<vmem>>, vector<1x8x8x4xf32>
    %40 = vector.shape_cast %39 : vector<1x8x8x4xf32> to vector<8x8x4xf32>
    %41 = vector.shape_cast %40 : vector<8x8x4xf32> to vector<64x4xf32>
    %c2_52 = arith.constant 2 : index
    %c1_53 = arith.constant 1 : index
    %c1_54 = arith.constant 1 : index
    %c0_55 = arith.constant 0 : index
    %42 = vector.load %arg1[%c2_52, %c1_53, %c1_54, %c0_55] : memref<4x9x9x4xf32, #tpu.memory_space<vmem>>, vector<1x8x8x4xf32>
    %43 = vector.shape_cast %42 : vector<1x8x8x4xf32> to vector<8x8x4xf32>
    %44 = vector.shape_cast %43 : vector<8x8x4xf32> to vector<64x4xf32>
    %c3_56 = arith.constant 3 : index
    %c1_57 = arith.constant 1 : index
    %c1_58 = arith.constant 1 : index
    %c0_59 = arith.constant 0 : index
    %45 = vector.load %arg1[%c3_56, %c1_57, %c1_58, %c0_59] : memref<4x9x9x4xf32, #tpu.memory_space<vmem>>, vector<1x8x8x4xf32>
    %46 = vector.shape_cast %45 : vector<1x8x8x4xf32> to vector<8x8x4xf32>
    %47 = vector.shape_cast %46 : vector<8x8x4xf32> to vector<64x4xf32>
    %48 = tpu.concatenate %2, %5, %8, %11, %14, %17, %20, %23, %26, %29, %32, %35, %38, %41, %44, %47 in 1 : vector<64x4xf32>, vector<64x4xf32>, vector<64x4xf32>, vector<64x4xf32>, vector<64x4xf32>, vector<64x4xf32>, vector<64x4xf32>, vector<64x4xf32>, vector<64x4xf32>, vector<64x4xf32>, vector<64x4xf32>, vector<64x4xf32>, vector<64x4xf32>, vector<64x4xf32>, vector<64x4xf32>, vector<64x4xf32> -> vector<64x64xf32>
    %c0_60 = arith.constant 0 : index
    %c0_61 = arith.constant 0 : index
    %49 = vector.load %arg2[%c0_60, %c0_61] : memref<64x8xf32, #tpu.memory_space<vmem>>, vector<64x8xf32>
    %cst = arith.constant dense<0.000000e+00> : vector<64x8xf32>
    %50 = tpu.matmul %48, %49, %cst {dimension_numbers = #tpu.dot_dimension_numbers<[1], [0], [0], [1], [0, 0, 1, 1], [], []>} : vector<64x64xf32>, vector<64x8xf32>, vector<64x8xf32> -> vector<64x8xf32>
    %c0_62 = arith.constant 0 : index
    %c0_63 = arith.constant 0 : index
    %c0_64 = arith.constant 0 : index
    %51 = vector.load %arg3[%c0_62, %c0_63, %c0_64] : memref<1x64x8xf32, #tpu.memory_space<vmem>>, vector<1x64x8xf32>
    %52 = vector.shape_cast %51 : vector<1x64x8xf32> to vector<64x8xf32>
    %53 = vector.shape_cast %50 : vector<64x8xf32> to vector<1x64x8xf32>
    tpu.vector_store %arg3[%c0_62, %c0_63, %c0_64], %53 {strides = array<i32>} : memref<1x64x8xf32, #tpu.memory_space<vmem>>, vector<1x64x8xf32>,
    %cst_65 = arith.constant dense<0.000000e+00> : vector<8xf32>
    %54 = vector.multi_reduction <add>, %50, %cst_65 [0] : vector<64x8xf32> to vector<8xf32>
    %55 = vector.shape_cast %54 : vector<8xf32> to vector<1x8xf32>
    %56 = arith.mulf %50, %50 : vector<64x8xf32>
    %cst_66 = arith.constant dense<0.000000e+00> : vector<8xf32>
    %57 = vector.multi_reduction <add>, %56, %cst_66 [0] : vector<64x8xf32> to vector<8xf32>
    %58 = vector.shape_cast %57 : vector<8xf32> to vector<1x8xf32>
    %59 = tpu.concatenate %55, %58 in 0 : vector<1x8xf32>, vector<1x8xf32> -> vector<2x8xf32>
    %c0_67 = arith.constant 0 : index
    %c0_68 = arith.constant 0 : index
    %c0_69 = arith.constant 0 : index
    %60 = vector.load %arg4[%c0_67, %c0_68, %c0_69] : memref<1x2x8xf32, #tpu.memory_space<vmem>>, vector<1x2x8xf32>
    %61 = vector.shape_cast %60 : vector<1x2x8xf32> to vector<2x8xf32>
    %62 = vector.shape_cast %59 : vector<2x8xf32> to vector<1x2x8xf32>
    tpu.vector_store %arg4[%c0_67, %c0_68, %c0_69], %62 {strides = array<i32>} : memref<1x2x8xf32, #tpu.memory_space<vmem>>, vector<1x2x8xf32>,
    return
  }
  func.func @transform_0(%arg0: i32) -> (i32, i32, i32, i32) {
    %c0_i32 = arith.constant 0 : i32
    %c0_i32_0 = arith.constant 0 : i32
    %c0_i32_1 = arith.constant 0 : i32
    %c0_i32_2 = arith.constant 0 : i32
    return %arg0, %c0_i32, %c0_i32_0, %c0_i32_1 : i32, i32, i32, i32
  }
  func.func @transform_1(%arg0: i32) -> (i32, i32) {
    %c0_i32 = arith.constant 0 : i32
    %c0_i32_0 = arith.constant 0 : i32
    %c0_i32_1 = arith.constant 0 : i32
    return %c0_i32, %c0_i32_0 : i32, i32
  }
  func.func @transform_2(%arg0: i32) -> (i32, i32, i32) {
    %c0_i32 = arith.constant 0 : i32
    %c0_i32_0 = arith.constant 0 : i32
    %c0_i32_1 = arith.constant 0 : i32
    return %arg0, %c0_i32, %c0_i32_0 : i32, i32, i32
  }
  func.func @transform_3(%arg0: i32) -> (i32, i32, i32) {
    %c0_i32 = arith.constant 0 : i32
    %c0_i32_0 = arith.constant 0 : i32
    %c0_i32_1 = arith.constant 0 : i32
    return %arg0, %c0_i32, %c0_i32_0 : i32, i32, i32
  }
}

module attributes {stable_mosaic.version = 11 : i64} {
  func.func @_conv_stats_kernel(%arg0: i32, %arg1: memref<4x5x5x8xf32, #tpu.memory_space<vmem>>, %arg2: memref<128x16xf32, #tpu.memory_space<vmem>>, %arg3: memref<1x16x16xf32, #tpu.memory_space<vmem>>, %arg4: memref<1x2x16xf32, #tpu.memory_space<vmem>>) attributes {dimension_semantics = [#tpu.dimension_semantics<parallel>], iteration_bounds = array<i64: 2>, scalar_prefetch = 0 : i64, scratch_operands = 0 : i64, tpu.core_type = #tpu.core_type<tc>, window_params = [{transform_indices = @transform_0, window_bounds = array<i64: 4, 5, 5, 8>}, {pipeline_mode = #tpu.pipeline_mode<synchronous>, transform_indices = @transform_1, window_bounds = array<i64: 128, 16>}, {transform_indices = @transform_2, window_bounds = array<i64: 1, 16, 16>}, {transform_indices = @transform_3, window_bounds = array<i64: 1, 2, 16>}]} {
    %c0 = arith.constant 0 : index
    %c0_0 = arith.constant 0 : index
    %c0_1 = arith.constant 0 : index
    %c0_2 = arith.constant 0 : index
    %0 = vector.load %arg1[%c0, %c0_0, %c0_1, %c0_2] : memref<4x5x5x8xf32, #tpu.memory_space<vmem>>, vector<1x4x4x8xf32>
    %1 = vector.shape_cast %0 : vector<1x4x4x8xf32> to vector<4x4x8xf32>
    %2 = vector.shape_cast %1 : vector<4x4x8xf32> to vector<16x8xf32>
    %c1 = arith.constant 1 : index
    %c0_3 = arith.constant 0 : index
    %c0_4 = arith.constant 0 : index
    %c0_5 = arith.constant 0 : index
    %3 = vector.load %arg1[%c1, %c0_3, %c0_4, %c0_5] : memref<4x5x5x8xf32, #tpu.memory_space<vmem>>, vector<1x4x4x8xf32>
    %4 = vector.shape_cast %3 : vector<1x4x4x8xf32> to vector<4x4x8xf32>
    %5 = vector.shape_cast %4 : vector<4x4x8xf32> to vector<16x8xf32>
    %c0_6 = arith.constant 0 : index
    %c0_7 = arith.constant 0 : index
    %c1_8 = arith.constant 1 : index
    %c0_9 = arith.constant 0 : index
    %6 = vector.load %arg1[%c0_6, %c0_7, %c1_8, %c0_9] : memref<4x5x5x8xf32, #tpu.memory_space<vmem>>, vector<1x4x4x8xf32>
    %7 = vector.shape_cast %6 : vector<1x4x4x8xf32> to vector<4x4x8xf32>
    %8 = vector.shape_cast %7 : vector<4x4x8xf32> to vector<16x8xf32>
    %c1_10 = arith.constant 1 : index
    %c0_11 = arith.constant 0 : index
    %c1_12 = arith.constant 1 : index
    %c0_13 = arith.constant 0 : index
    %9 = vector.load %arg1[%c1_10, %c0_11, %c1_12, %c0_13] : memref<4x5x5x8xf32, #tpu.memory_space<vmem>>, vector<1x4x4x8xf32>
    %10 = vector.shape_cast %9 : vector<1x4x4x8xf32> to vector<4x4x8xf32>
    %11 = vector.shape_cast %10 : vector<4x4x8xf32> to vector<16x8xf32>
    %c2 = arith.constant 2 : index
    %c0_14 = arith.constant 0 : index
    %c0_15 = arith.constant 0 : index
    %c0_16 = arith.constant 0 : index
    %12 = vector.load %arg1[%c2, %c0_14, %c0_15, %c0_16] : memref<4x5x5x8xf32, #tpu.memory_space<vmem>>, vector<1x4x4x8xf32>
    %13 = vector.shape_cast %12 : vector<1x4x4x8xf32> to vector<4x4x8xf32>
    %14 = vector.shape_cast %13 : vector<4x4x8xf32> to vector<16x8xf32>
    %c3 = arith.constant 3 : index
    %c0_17 = arith.constant 0 : index
    %c0_18 = arith.constant 0 : index
    %c0_19 = arith.constant 0 : index
    %15 = vector.load %arg1[%c3, %c0_17, %c0_18, %c0_19] : memref<4x5x5x8xf32, #tpu.memory_space<vmem>>, vector<1x4x4x8xf32>
    %16 = vector.shape_cast %15 : vector<1x4x4x8xf32> to vector<4x4x8xf32>
    %17 = vector.shape_cast %16 : vector<4x4x8xf32> to vector<16x8xf32>
    %c2_20 = arith.constant 2 : index
    %c0_21 = arith.constant 0 : index
    %c1_22 = arith.constant 1 : index
    %c0_23 = arith.constant 0 : index
    %18 = vector.load %arg1[%c2_20, %c0_21, %c1_22, %c0_23] : memref<4x5x5x8xf32, #tpu.memory_space<vmem>>, vector<1x4x4x8xf32>
    %19 = vector.shape_cast %18 : vector<1x4x4x8xf32> to vector<4x4x8xf32>
    %20 = vector.shape_cast %19 : vector<4x4x8xf32> to vector<16x8xf32>
    %c3_24 = arith.constant 3 : index
    %c0_25 = arith.constant 0 : index
    %c1_26 = arith.constant 1 : index
    %c0_27 = arith.constant 0 : index
    %21 = vector.load %arg1[%c3_24, %c0_25, %c1_26, %c0_27] : memref<4x5x5x8xf32, #tpu.memory_space<vmem>>, vector<1x4x4x8xf32>
    %22 = vector.shape_cast %21 : vector<1x4x4x8xf32> to vector<4x4x8xf32>
    %23 = vector.shape_cast %22 : vector<4x4x8xf32> to vector<16x8xf32>
    %c0_28 = arith.constant 0 : index
    %c1_29 = arith.constant 1 : index
    %c0_30 = arith.constant 0 : index
    %c0_31 = arith.constant 0 : index
    %24 = vector.load %arg1[%c0_28, %c1_29, %c0_30, %c0_31] : memref<4x5x5x8xf32, #tpu.memory_space<vmem>>, vector<1x4x4x8xf32>
    %25 = vector.shape_cast %24 : vector<1x4x4x8xf32> to vector<4x4x8xf32>
    %26 = vector.shape_cast %25 : vector<4x4x8xf32> to vector<16x8xf32>
    %c1_32 = arith.constant 1 : index
    %c1_33 = arith.constant 1 : index
    %c0_34 = arith.constant 0 : index
    %c0_35 = arith.constant 0 : index
    %27 = vector.load %arg1[%c1_32, %c1_33, %c0_34, %c0_35] : memref<4x5x5x8xf32, #tpu.memory_space<vmem>>, vector<1x4x4x8xf32>
    %28 = vector.shape_cast %27 : vector<1x4x4x8xf32> to vector<4x4x8xf32>
    %29 = vector.shape_cast %28 : vector<4x4x8xf32> to vector<16x8xf32>
    %c0_36 = arith.constant 0 : index
    %c1_37 = arith.constant 1 : index
    %c1_38 = arith.constant 1 : index
    %c0_39 = arith.constant 0 : index
    %30 = vector.load %arg1[%c0_36, %c1_37, %c1_38, %c0_39] : memref<4x5x5x8xf32, #tpu.memory_space<vmem>>, vector<1x4x4x8xf32>
    %31 = vector.shape_cast %30 : vector<1x4x4x8xf32> to vector<4x4x8xf32>
    %32 = vector.shape_cast %31 : vector<4x4x8xf32> to vector<16x8xf32>
    %c1_40 = arith.constant 1 : index
    %c1_41 = arith.constant 1 : index
    %c1_42 = arith.constant 1 : index
    %c0_43 = arith.constant 0 : index
    %33 = vector.load %arg1[%c1_40, %c1_41, %c1_42, %c0_43] : memref<4x5x5x8xf32, #tpu.memory_space<vmem>>, vector<1x4x4x8xf32>
    %34 = vector.shape_cast %33 : vector<1x4x4x8xf32> to vector<4x4x8xf32>
    %35 = vector.shape_cast %34 : vector<4x4x8xf32> to vector<16x8xf32>
    %c2_44 = arith.constant 2 : index
    %c1_45 = arith.constant 1 : index
    %c0_46 = arith.constant 0 : index
    %c0_47 = arith.constant 0 : index
    %36 = vector.load %arg1[%c2_44, %c1_45, %c0_46, %c0_47] : memref<4x5x5x8xf32, #tpu.memory_space<vmem>>, vector<1x4x4x8xf32>
    %37 = vector.shape_cast %36 : vector<1x4x4x8xf32> to vector<4x4x8xf32>
    %38 = vector.shape_cast %37 : vector<4x4x8xf32> to vector<16x8xf32>
    %c3_48 = arith.constant 3 : index
    %c1_49 = arith.constant 1 : index
    %c0_50 = arith.constant 0 : index
    %c0_51 = arith.constant 0 : index
    %39 = vector.load %arg1[%c3_48, %c1_49, %c0_50, %c0_51] : memref<4x5x5x8xf32, #tpu.memory_space<vmem>>, vector<1x4x4x8xf32>
    %40 = vector.shape_cast %39 : vector<1x4x4x8xf32> to vector<4x4x8xf32>
    %41 = vector.shape_cast %40 : vector<4x4x8xf32> to vector<16x8xf32>
    %c2_52 = arith.constant 2 : index
    %c1_53 = arith.constant 1 : index
    %c1_54 = arith.constant 1 : index
    %c0_55 = arith.constant 0 : index
    %42 = vector.load %arg1[%c2_52, %c1_53, %c1_54, %c0_55] : memref<4x5x5x8xf32, #tpu.memory_space<vmem>>, vector<1x4x4x8xf32>
    %43 = vector.shape_cast %42 : vector<1x4x4x8xf32> to vector<4x4x8xf32>
    %44 = vector.shape_cast %43 : vector<4x4x8xf32> to vector<16x8xf32>
    %c3_56 = arith.constant 3 : index
    %c1_57 = arith.constant 1 : index
    %c1_58 = arith.constant 1 : index
    %c0_59 = arith.constant 0 : index
    %45 = vector.load %arg1[%c3_56, %c1_57, %c1_58, %c0_59] : memref<4x5x5x8xf32, #tpu.memory_space<vmem>>, vector<1x4x4x8xf32>
    %46 = vector.shape_cast %45 : vector<1x4x4x8xf32> to vector<4x4x8xf32>
    %47 = vector.shape_cast %46 : vector<4x4x8xf32> to vector<16x8xf32>
    %48 = tpu.concatenate %2, %5, %8, %11, %14, %17, %20, %23, %26, %29, %32, %35, %38, %41, %44, %47 in 1 : vector<16x8xf32>, vector<16x8xf32>, vector<16x8xf32>, vector<16x8xf32>, vector<16x8xf32>, vector<16x8xf32>, vector<16x8xf32>, vector<16x8xf32>, vector<16x8xf32>, vector<16x8xf32>, vector<16x8xf32>, vector<16x8xf32>, vector<16x8xf32>, vector<16x8xf32>, vector<16x8xf32>, vector<16x8xf32> -> vector<16x128xf32>
    %c0_60 = arith.constant 0 : index
    %c0_61 = arith.constant 0 : index
    %49 = vector.load %arg2[%c0_60, %c0_61] : memref<128x16xf32, #tpu.memory_space<vmem>>, vector<128x16xf32>
    %cst = arith.constant dense<0.000000e+00> : vector<16x16xf32>
    %50 = tpu.matmul %48, %49, %cst {dimension_numbers = #tpu.dot_dimension_numbers<[1], [0], [0], [1], [0, 0, 1, 1], [], []>} : vector<16x128xf32>, vector<128x16xf32>, vector<16x16xf32> -> vector<16x16xf32>
    %c0_62 = arith.constant 0 : index
    %c0_63 = arith.constant 0 : index
    %c0_64 = arith.constant 0 : index
    %51 = vector.load %arg3[%c0_62, %c0_63, %c0_64] : memref<1x16x16xf32, #tpu.memory_space<vmem>>, vector<1x16x16xf32>
    %52 = vector.shape_cast %51 : vector<1x16x16xf32> to vector<16x16xf32>
    %53 = vector.shape_cast %50 : vector<16x16xf32> to vector<1x16x16xf32>
    tpu.vector_store %arg3[%c0_62, %c0_63, %c0_64], %53 {strides = array<i32>} : memref<1x16x16xf32, #tpu.memory_space<vmem>>, vector<1x16x16xf32>,
    %cst_65 = arith.constant dense<0.000000e+00> : vector<16xf32>
    %54 = vector.multi_reduction <add>, %50, %cst_65 [0] : vector<16x16xf32> to vector<16xf32>
    %55 = vector.shape_cast %54 : vector<16xf32> to vector<1x16xf32>
    %56 = arith.mulf %50, %50 : vector<16x16xf32>
    %cst_66 = arith.constant dense<0.000000e+00> : vector<16xf32>
    %57 = vector.multi_reduction <add>, %56, %cst_66 [0] : vector<16x16xf32> to vector<16xf32>
    %58 = vector.shape_cast %57 : vector<16xf32> to vector<1x16xf32>
    %59 = tpu.concatenate %55, %58 in 0 : vector<1x16xf32>, vector<1x16xf32> -> vector<2x16xf32>
    %c0_67 = arith.constant 0 : index
    %c0_68 = arith.constant 0 : index
    %c0_69 = arith.constant 0 : index
    %60 = vector.load %arg4[%c0_67, %c0_68, %c0_69] : memref<1x2x16xf32, #tpu.memory_space<vmem>>, vector<1x2x16xf32>
    %61 = vector.shape_cast %60 : vector<1x2x16xf32> to vector<2x16xf32>
    %62 = vector.shape_cast %59 : vector<2x16xf32> to vector<1x2x16xf32>
    tpu.vector_store %arg4[%c0_67, %c0_68, %c0_69], %62 {strides = array<i32>} : memref<1x2x16xf32, #tpu.memory_space<vmem>>, vector<1x2x16xf32>,
    return
  }
  func.func @transform_0(%arg0: i32) -> (i32, i32, i32, i32) {
    %c0_i32 = arith.constant 0 : i32
    %c0_i32_0 = arith.constant 0 : i32
    %c0_i32_1 = arith.constant 0 : i32
    %c0_i32_2 = arith.constant 0 : i32
    return %arg0, %c0_i32, %c0_i32_0, %c0_i32_1 : i32, i32, i32, i32
  }
  func.func @transform_1(%arg0: i32) -> (i32, i32) {
    %c0_i32 = arith.constant 0 : i32
    %c0_i32_0 = arith.constant 0 : i32
    %c0_i32_1 = arith.constant 0 : i32
    return %c0_i32, %c0_i32_0 : i32, i32
  }
  func.func @transform_2(%arg0: i32) -> (i32, i32, i32) {
    %c0_i32 = arith.constant 0 : i32
    %c0_i32_0 = arith.constant 0 : i32
    %c0_i32_1 = arith.constant 0 : i32
    return %arg0, %c0_i32, %c0_i32_0 : i32, i32, i32
  }
  func.func @transform_3(%arg0: i32) -> (i32, i32, i32) {
    %c0_i32 = arith.constant 0 : i32
    %c0_i32_0 = arith.constant 0 : i32
    %c0_i32_1 = arith.constant 0 : i32
    return %arg0, %c0_i32, %c0_i32_0 : i32, i32, i32
  }
}

module attributes {stable_mosaic.version = 11 : i64} {
  func.func @_head_kernel(%arg0: i32, %arg1: memref<2x256xf32, #tpu.memory_space<vmem>>, %arg2: memref<1x256xf32, #tpu.memory_space<vmem>>, %arg3: memref<1x256xf32, #tpu.memory_space<vmem>>, %arg4: memref<256x32xf32, #tpu.memory_space<vmem>>, %arg5: memref<1x32xf32, #tpu.memory_space<vmem>>, %arg6: memref<32x16xf32, #tpu.memory_space<vmem>>, %arg7: memref<1x16xf32, #tpu.memory_space<vmem>>, %arg8: memref<2x16xf32, #tpu.memory_space<vmem>>) attributes {dimension_semantics = [#tpu.dimension_semantics<arbitrary>], iteration_bounds = array<i64: 1>, scalar_prefetch = 0 : i64, scratch_operands = 0 : i64, tpu.core_type = #tpu.core_type<tc>, window_params = [{pipeline_mode = #tpu.pipeline_mode<synchronous>, transform_indices = @transform_0, window_bounds = array<i64: 2, 256>}, {pipeline_mode = #tpu.pipeline_mode<synchronous>, transform_indices = @transform_1, window_bounds = array<i64: 1, 256>}, {pipeline_mode = #tpu.pipeline_mode<synchronous>, transform_indices = @transform_2, window_bounds = array<i64: 1, 256>}, {pipeline_mode = #tpu.pipeline_mode<synchronous>, transform_indices = @transform_3, window_bounds = array<i64: 256, 32>}, {pipeline_mode = #tpu.pipeline_mode<synchronous>, transform_indices = @transform_4, window_bounds = array<i64: 1, 32>}, {pipeline_mode = #tpu.pipeline_mode<synchronous>, transform_indices = @transform_5, window_bounds = array<i64: 32, 16>}, {pipeline_mode = #tpu.pipeline_mode<synchronous>, transform_indices = @transform_6, window_bounds = array<i64: 1, 16>}, {pipeline_mode = #tpu.pipeline_mode<synchronous>, transform_indices = @transform_7, window_bounds = array<i64: 2, 16>}]} {
    %c0 = arith.constant 0 : index
    %c0_0 = arith.constant 0 : index
    %0 = vector.load %arg1[%c0, %c0_0] : memref<2x256xf32, #tpu.memory_space<vmem>>, vector<2x256xf32>
    %c0_1 = arith.constant 0 : index
    %c0_2 = arith.constant 0 : index
    %1 = vector.load %arg2[%c0_1, %c0_2] : memref<1x256xf32, #tpu.memory_space<vmem>>, vector<1x256xf32>
    %2 = vector.broadcast %1 : vector<1x256xf32> to vector<2x256xf32>
    %3 = arith.mulf %0, %2 : vector<2x256xf32>
    %c0_3 = arith.constant 0 : index
    %c0_4 = arith.constant 0 : index
    %4 = vector.load %arg3[%c0_3, %c0_4] : memref<1x256xf32, #tpu.memory_space<vmem>>, vector<1x256xf32>
    %5 = vector.broadcast %4 : vector<1x256xf32> to vector<2x256xf32>
    %6 = arith.addf %3, %5 : vector<2x256xf32>
    %cst = arith.constant 0.000000e+00 : f32
    %7 = vector.broadcast %cst : f32 to vector<2x256xf32>
    %8 = arith.maximumf %6, %7 : vector<2x256xf32>
    %c0_5 = arith.constant 0 : index
    %c0_6 = arith.constant 0 : index
    %9 = vector.load %arg4[%c0_5, %c0_6] : memref<256x32xf32, #tpu.memory_space<vmem>>, vector<256x32xf32>
    %cst_7 = arith.constant dense<0.000000e+00> : vector<2x32xf32>
    %10 = tpu.matmul %8, %9, %cst_7 {dimension_numbers = #tpu.dot_dimension_numbers<[1], [0], [0], [1], [0, 0, 1, 1], [], []>} : vector<2x256xf32>, vector<256x32xf32>, vector<2x32xf32> -> vector<2x32xf32>
    %c0_8 = arith.constant 0 : index
    %c0_9 = arith.constant 0 : index
    %11 = vector.load %arg5[%c0_8, %c0_9] : memref<1x32xf32, #tpu.memory_space<vmem>>, vector<1x32xf32>
    %12 = vector.broadcast %11 : vector<1x32xf32> to vector<2x32xf32>
    %13 = arith.addf %10, %12 : vector<2x32xf32>
    %cst_10 = arith.constant 0.000000e+00 : f32
    %14 = vector.broadcast %cst_10 : f32 to vector<2x32xf32>
    %15 = arith.maximumf %13, %14 : vector<2x32xf32>
    %c0_11 = arith.constant 0 : index
    %c0_12 = arith.constant 0 : index
    %16 = vector.load %arg6[%c0_11, %c0_12] : memref<32x16xf32, #tpu.memory_space<vmem>>, vector<32x16xf32>
    %cst_13 = arith.constant dense<0.000000e+00> : vector<2x16xf32>
    %17 = tpu.matmul %15, %16, %cst_13 {dimension_numbers = #tpu.dot_dimension_numbers<[1], [0], [0], [1], [0, 0, 1, 1], [], []>} : vector<2x32xf32>, vector<32x16xf32>, vector<2x16xf32> -> vector<2x16xf32>
    %c0_14 = arith.constant 0 : index
    %c0_15 = arith.constant 0 : index
    %18 = vector.load %arg7[%c0_14, %c0_15] : memref<1x16xf32, #tpu.memory_space<vmem>>, vector<1x16xf32>
    %19 = vector.broadcast %18 : vector<1x16xf32> to vector<2x16xf32>
    %20 = arith.addf %17, %19 : vector<2x16xf32>
    %c0_16 = arith.constant 0 : index
    %c0_17 = arith.constant 0 : index
    %21 = vector.load %arg8[%c0_16, %c0_17] : memref<2x16xf32, #tpu.memory_space<vmem>>, vector<2x16xf32>
    tpu.vector_store %arg8[%c0_16, %c0_17], %20 {strides = array<i32>} : memref<2x16xf32, #tpu.memory_space<vmem>>, vector<2x16xf32>,
    return
  }
  func.func @transform_0(%arg0: i32) -> (i32, i32) {
    %c0_i32 = arith.constant 0 : i32
    %c0_i32_0 = arith.constant 0 : i32
    %c0_i32_1 = arith.constant 0 : i32
    return %c0_i32, %c0_i32_0 : i32, i32
  }
  func.func @transform_1(%arg0: i32) -> (i32, i32) {
    %c0_i32 = arith.constant 0 : i32
    %c0_i32_0 = arith.constant 0 : i32
    %c0_i32_1 = arith.constant 0 : i32
    return %c0_i32, %c0_i32_0 : i32, i32
  }
  func.func @transform_2(%arg0: i32) -> (i32, i32) {
    %c0_i32 = arith.constant 0 : i32
    %c0_i32_0 = arith.constant 0 : i32
    %c0_i32_1 = arith.constant 0 : i32
    return %c0_i32, %c0_i32_0 : i32, i32
  }
  func.func @transform_3(%arg0: i32) -> (i32, i32) {
    %c0_i32 = arith.constant 0 : i32
    %c0_i32_0 = arith.constant 0 : i32
    %c0_i32_1 = arith.constant 0 : i32
    return %c0_i32, %c0_i32_0 : i32, i32
  }
  func.func @transform_4(%arg0: i32) -> (i32, i32) {
    %c0_i32 = arith.constant 0 : i32
    %c0_i32_0 = arith.constant 0 : i32
    %c0_i32_1 = arith.constant 0 : i32
    return %c0_i32, %c0_i32_0 : i32, i32
  }
  func.func @transform_5(%arg0: i32) -> (i32, i32) {
    %c0_i32 = arith.constant 0 : i32
    %c0_i32_0 = arith.constant 0 : i32
    %c0_i32_1 = arith.constant 0 : i32
    return %c0_i32, %c0_i32_0 : i32, i32
  }
  func.func @transform_6(%arg0: i32) -> (i32, i32) {
    %c0_i32 = arith.constant 0 : i32
    %c0_i32_0 = arith.constant 0 : i32
    %c0_i32_1 = arith.constant 0 : i32
    return %c0_i32, %c0_i32_0 : i32, i32
  }
  func.func @transform_7(%arg0: i32) -> (i32, i32) {
    %c0_i32 = arith.constant 0 : i32
    %c0_i32_0 = arith.constant 0 : i32
    %c0_i32_1 = arith.constant 0 : i32
    return %c0_i32, %c0_i32_0 : i32, i32
  }
}

</mosaic_0001>

<llo_original>
// kernel: tile.13
$region0: #{tile.13}
  #allocation0 [shape = 's32[1]{0}', space=sflag, size = 0x4, scoped, tag = 'scoped memory for tile.13']
  %s0 = inlined_call_operand.vmem [shape: f32[16], index: 0, kind: input, shape index: {}]
  %s1 = inlined_call_operand.vmem [shape: f32[16,16], index: 1, kind: output, shape index: {}]
  // Predicated region
  $region2: #{tile.13} parent=0 // pred_check
    _
  $region3: #{tile.13} parent=0 // pred_check_branch
    %3 = sbr.rel (0) target = $region5
  $region4: #{tile.13} parent=0 // pred_region
    _
  $region5: #{tile.13} parent=0 // pred_fallthru
    _
  %v4 = vld [vmem:[%s0] ss:$0 sm:$0xff]
  %5 = vst [vmem:[%s1] sm:$0xff] %v4
  %s6 = scalar_lea.vmem %s1, 8
  %7 = vst [vmem:[%s6] sm:$0xff] %v4

// kernel: tile.14
$region0: #{tile.14}
  %s0 = inlined_call_operand.vmem [shape: f32[16,16], index: 0, kind: input, shape index: {}]
  %s1 = inlined_call_operand.vmem [shape: f32[1,256], index: 1, kind: output, shape index: {}]
  $region1: #{tile.14} parent=0
    #allocation0 [shape = 'u8[8192]{0}', space=vmem, size = 0x2000, scoped, tag = 'scoped mem for output reshape']
    %s2 = smov 3
    %v3 = vld [vmem:[%s0] ss:$8 sm:%s2]
    %vm4 = vcmask 130048
    %5 = vst.msk [vmem:[#allocation0] ss:$8 sm:$0x3] %vm4, %v3
    %s6 = scalar_lea.vmem %s0, 7
    %s7 = smov 3
    %v8 = vld [vmem:[%s6] ss:$8 sm:%s7]
    %9 = vrot.lane.b32.xlu0 %v8, 112
    %v10 = vpop.permute.xlu0 %9
    %vm11 = vcmask 1048448
    %12 = vst.msk [vmem:[#allocation0] ss:$8 sm:$0x3] %vm11, %v10
    %s13 = scalar_lea.vmem %s0, 6
    %s14 = smov 3
    %v15 = vld [vmem:[%s13] ss:$8 sm:%s14]
    %16 = vrot.lane.b32.xlu0 %v15, 96
    %v17 = vpop.permute.xlu0 %16
    %vm18 = vcmask 917248
    %19 = vst.msk [vmem:[#allocation0] ss:$8 sm:$0x3] %vm18, %v17
    %s20 = scalar_lea.vmem %s0, 5
    %s21 = smov 3
    %v22 = vld [vmem:[%s20] ss:$8 sm:%s21]
    %23 = vrot.lane.b32.xlu0 %v22, 80
    %v24 = vpop.permute.xlu0 %23
    %vm25 = vcmask 786048
    %26 = vst.msk [vmem:[#allocation0] ss:$8 sm:$0x3] %vm25, %v24
    %s27 = scalar_lea.vmem %s0, 4
    %s28 = smov 3
    %v29 = vld [vmem:[%s27] ss:$8 sm:%s28]
    %30 = vrot.lane.b32.xlu0 %v29, 64
    %v31 = vpop.permute.xlu0 %30
    %vm32 = vcmask 654848
    %33 = vst.msk [vmem:[#allocation0] ss:$8 sm:$0x3] %vm32, %v31
    %s34 = scalar_lea.vmem %s0, 3
    %s35 = smov 3
    %v36 = vld [vmem:[%s34] ss:$8 sm:%s35]
    %37 = vrot.lane.b32.xlu0 %v36, 48
    %v38 = vpop.permute.xlu0 %37
    %vm39 = vcmask 523648
    %40 = vst.msk [vmem:[#allocation0] ss:$8 sm:$0x3] %vm39, %v38
    %s41 = scalar_lea.vmem %s0, 2
    %s42 = smov 3
    %v43 = vld [vmem:[%s41] ss:$8 sm:%s42]
    %44 = vrot.lane.b32.xlu0 %v43, 32
    %v45 = vpop.permute.xlu0 %44
    %vm46 = vcmask 392448
    %47 = vst.msk [vmem:[#allocation0] ss:$8 sm:$0x3] %vm46, %v45
    %s48 = scalar_lea.vmem %s0, 1
    %s49 = smov 3
    %v50 = vld [vmem:[%s48] ss:$8 sm:%s49]
    %51 = vrot.lane.b32.xlu0 %v50, 16
    %v52 = vpop.permute.xlu0 %51
    %vm53 = vcmask 261248
    %54 = vst.msk [vmem:[#allocation0] ss:$8 sm:$0x3] %vm53, %v52
    %s56 = sshll.u32 1, 1
    %s57 = ssub.s32 %s56, 1
    %v59 = vld [vmem:[#allocation0] sm:%s57]
    %s60 = sshll.u32 1, 1
    %s61 = ssub.s32 %s60, 1
    %62 = vst [vmem:[%s1] sm:%s61] %v59
    %s63 = scalar_lea.vmem [#allocation0], 8
    %v64 = vld [vmem:[%s63] sm:%s57]
    %s65 = sshll.u32 1, 1
    %s66 = ssub.s32 %s65, 1
    %s67 = scalar_lea.vmem %s1, 1
    %68 = vst [vmem:[%s67] sm:%s66] %v64

// kernel: _vae_encoder_forward.4
$region0: #{_vae_encoder_forward.4}
  #allocation0 [shape = 'u32[]', space=smem, size = 0x4, offset = 0x4, fixed_abs, tag = 'smem constant byte address 0x4 - core index']
  #allocation1 [shape = 'u32[144,128]{1,0:T(1,128)}', space=vmem, size = 0x12000, scoped, tag = 'internal scratch']
  %s0 = inlined_call_operand.vmem [shape: f32[8,5,5,8], index: 0, kind: input, shape index: {}]
  %s1 = inlined_call_operand.vmem [shape: f32[128,16], index: 1, kind: input, shape index: {}]
  %s2 = inlined_call_operand.vmem [shape: f32[2,16,16], index: 2, kind: output, shape index: {0}]
  %s3 = inlined_call_operand.vmem [shape: f32[2,2,16], index: 3, kind: output, shape index: {1}]
  %4 = xla_tuple %s2, %s3
  %s5 = sld [smem:[#allocation0]]
  $region49: #{_vae_encoder_forward.4} parent=0
    _
  %s7 = ssub.s32 1, %s5
  %s8 = scalar_select 0, %s7, %s5
  loop: start=0, step=1, limit=4
  $region2: #{_vae_encoder_forward.4} parent=0 // loop_pre_header
    _
  $region3: #{_vae_encoder_forward.4} parent=0 // loop_header
    %s10 = sphi 0, %s14
    %p11 = scmp.ge.s32.totalorder %s10, 4
    %s20 = sphi 0, %s22
    %s23 = sphi 0, %s20
    %s24 = sphi 0, %s23
    %s40 = sphi 0, %s24
    %s44 = sphi 0, %s44
    %s46 = sphi 0, %s44
    %s47 = sphi 0, %s46
    %s61 = sphi 0, %s47
    %s67 = sphi 0, %s69
    %s70 = sphi 0, %s67
    %s71 = sphi 0, %s70
    %s87 = sphi 0, %s71
    %s93 = sphi 0, %s95
    %s96 = sphi 0, %s93
    %s97 = sphi 0, %s96
    %s113 = sphi 0, %s97
  $region4: #{_vae_encoder_forward.4} parent=0 // loop_header_branch
    %13 = sbr.rel (%p11) target = $region8
  $region5: #{_vae_encoder_forward.4} parent=0 // loop_body
    %s15 = ssub.s32 %s10, 1
    %s16 = ssub.s32 %s10, 2
    %s17 = sadd.s32 %s10, 1
    %s18 = ssub.s32 %s10, %s17
    %p19 = scmp.eq.s32.totalorder %s18, 0
    %s21 = sadd.s32 %s20, 1
    %s22 = scalar_select %p19, %s20, %s21
    %p25 = pneg %p19
    %p26 = scmp.eq.s32.totalorder %s10, 1
    %p27 = por %p25, %p26
    %p28 = scmp.ne.s32.totalorder %s20, %s23
    %p29 = scmp.eq.s32.totalorder %s10, 0
    %p30 = por %p28, %p29
    %p31 = scmp.ne.s32.totalorder %s20, %s23
    %p32 = scmp.eq.s32.totalorder %s15, 1
    %p33 = por %p31, %p32
    %p34 = scmp.ne.s32.totalorder %s23, %s24
    %p35 = scmp.eq.s32.totalorder %s15, 0
    %p36 = por %p34, %p35
    %p37 = scmp.ne.s32.totalorder %s23, %s24
    %p38 = scmp.eq.s32.totalorder %s16, 1
    %p39 = por %p37, %p38
    %p41 = scmp.ne.s32.totalorder %s24, %s40
    %p42 = scmp.eq.s32.totalorder %s16, 0
    %p43 = por %p41, %p42
    %s45 = sadd.s32 %s44, 1
    %p48 = scmp.eq.s32.totalorder %s10, 1
    %p49 = scmp.ne.s32.totalorder %s44, %s46
    %p50 = scmp.eq.s32.totalorder %s10, 0
    %p51 = por %p49, %p50
    %p52 = scmp.ne.s32.totalorder %s44, %s46
    %p53 = scmp.eq.s32.totalorder %s15, 1
    %p54 = por %p52, %p53
    %p55 = scmp.ne.s32.totalorder %s46, %s47
    %p56 = scmp.eq.s32.totalorder %s15, 0
    %p57 = por %p55, %p56
    %p58 = scmp.ne.s32.totalorder %s46, %s47
    %p59 = scmp.eq.s32.totalorder %s16, 1
    %p60 = por %p58, %p59
    %p62 = scmp.ne.s32.totalorder %s47, %s61
    %p63 = scmp.eq.s32.totalorder %s16, 0
    %p64 = por %p62, %p63
    %s65 = ssub.s32 %s10, %s17
    %p66 = scmp.eq.s32.totalorder %s65, 0
    %s68 = sadd.s32 %s67, 1
    %s69 = scalar_select %p66, %s67, %s68
    %p72 = pneg %p66
    %p73 = scmp.eq.s32.totalorder %s10, 1
    %p74 = por %p72, %p73
    %p75 = scmp.ne.s32.totalorder %s67, %s70
    %p76 = scmp.eq.s32.totalorder %s10, 0
    %p77 = por %p75, %p76
    %p78 = scmp.ne.s32.totalorder %s67, %s70
    %p79 = scmp.eq.s32.totalorder %s15, 1
    %p80 = por %p78, %p79
    %p81 = scmp.ne.s32.totalorder %s70, %s71
    %p82 = scmp.eq.s32.totalorder %s15, 0
    %p83 = por %p81, %p82
    %p84 = scmp.ne.s32.totalorder %s70, %s71
    %p85 = scmp.eq.s32.totalorder %s16, 1
    %p86 = por %p84, %p85
    %p88 = scmp.ne.s32.totalorder %s71, %s87
    %p89 = scmp.eq.s32.totalorder %s16, 0
    %p90 = por %p88, %p89
    %s91 = ssub.s32 %s10, %s17
    %p92 = scmp.eq.s32.totalorder %s91, 0
    %s94 = sadd.s32 %s93, 1
    %s95 = scalar_select %p92, %s93, %s94
    %p98 = pneg %p92
    %p99 = scmp.eq.s32.totalorder %s10, 1
    %p100 = por %p98, %p99
    %p101 = scmp.ne.s32.totalorder %s93, %s96
    %p102 = scmp.eq.s32.totalorder %s10, 0
    %p103 = por %p101, %p102
    %p104 = scmp.ne.s32.totalorder %s93, %s96
    %p105 = scmp.eq.s32.totalorder %s15, 1
    %p106 = por %p104, %p105
    %p107 = scmp.ne.s32.totalorder %s96, %s97
    %p108 = scmp.eq.s32.totalorder %s15, 0
    %p109 = por %p107, %p108
    %p110 = scmp.ne.s32.totalorder %s96, %s97
    %p111 = scmp.eq.s32.totalorder %s16, 1
    %p112 = por %p110, %p111
    %p114 = scmp.ne.s32.totalorder %s97, %s113
    %p115 = scmp.eq.s32.totalorder %s16, 0
    %p116 = por %p114, %p115
    %p117 = scmp.le.s32.totalorder 1, %s10
    %p118 = scmp.lt.s32.totalorder %s10, 3
    %p119 = pnand %p117, %p118
    %p120 = pneg %p119
    // Predicated region
    $region9: #{_vae_encoder_forward.4} parent=5 // pred_check
      _
    $region10: #{_vae_encoder_forward.4} parent=5 // pred_check_branch
      %122 = sbr.rel (%p119) target = $region12
    $region11: #{_vae_encoder_forward.4} parent=5 // pred_region
      %s123 = ssub.s32 %s10, 1
      // Predicated region
      $region13: #{_vae_encoder_forward.4} parent=11 // pred_check
        %p124 = pneg %p57
      $region14: #{_vae_encoder_forward.4} parent=11 // pred_check_branch
        %126 = sbr.rel (%p124) target = $region16
      $region15: #{_vae_encoder_forward.4} parent=11 // pred_region
        _
      $region16: #{_vae_encoder_forward.4} parent=11 // pred_fallthru
        _
    $region12: #{_vae_encoder_forward.4} parent=5 // pred_fallthru
      _
    %p127 = scmp.lt.s32.totalorder %s10, 2
    // Predicated region
    $region17: #{_vae_encoder_forward.4} parent=5 // pred_check
      %p128 = pneg %p127
    $region18: #{_vae_encoder_forward.4} parent=5 // pred_check_branch
      %130 = sbr.rel (%p128) target = $region20
    $region19: #{_vae_encoder_forward.4} parent=5 // pred_region
      // Predicated region
      $region21: #{_vae_encoder_forward.4} parent=19 // pred_check
        %p131 = pneg %p30
      $region22: #{_vae_encoder_forward.4} parent=19 // pred_check_branch
        %133 = sbr.rel (%p131) target = $region24
      $region23: #{_vae_encoder_forward.4} parent=19 // pred_region
        %s134 = smul.u32 4, %s10
        %p135 = scmp.lt.s32.totalorder %s134, 7
        %s136 = scalar_select %p135, %s134, 7
        %s137 = smul.addr %s136, 5
        %s138 = smul.addr %s137, 8
        %s139 = scalar_lea.vmem %s0, %s138
        %s140 = smul.u32 4, %s10
      $region24: #{_vae_encoder_forward.4} parent=19 // pred_fallthru
        _
    $region20: #{_vae_encoder_forward.4} parent=5 // pred_fallthru
      _
    %p141 = scmp.le.s32.totalorder 1, %s10
    %p142 = scmp.lt.s32.totalorder %s10, 3
    %p143 = pnand %p141, %p142
    %p144 = pneg %p143
    // Predicated region
    $region25: #{_vae_encoder_forward.4} parent=5 // pred_check
      _
    $region26: #{_vae_encoder_forward.4} parent=5 // pred_check_branch
      %146 = sbr.rel (%p143) target = $region28
    $region27: #{_vae_encoder_forward.4} parent=5 // pred_region
      %s147 = ssub.s32 %s10, 1
      %s148 = smul.u32 4, %s15
      %p149 = scmp.lt.s32.totalorder %s148, 7
      %s150 = scalar_select %p149, %s148, 7
      %s151 = smul.addr %s150, 5
      %s152 = smul.addr %s151, 8
      %s153 = scalar_lea.vmem %s0, %s152
      %p154 = pneg %p36
      %p155 = pneg %p33
      %p156 = pneg %p57
      %p157 = pneg %p54
      %p158 = pneg %p83
      %p159 = pneg %p80
      %p160 = scmp.lt.s32.totalorder %s15, 1
      %s161 = scalar_select %p160, %s15, 1
      %s162 = smul.addr %s161, 2
      %s163 = smul.addr %s162, 8
      %s164 = scalar_lea.vmem %s2, %s163
      %p165 = pneg %p109
      %p166 = pneg %p106
      %p167 = scmp.lt.s32.totalorder %s15, 1
      %s168 = scalar_select %p167, %s15, 1
      %s169 = smul.addr %s168, 2
      %s170 = scalar_lea.vmem %s3, %s169
      %s171 = smul.u32 4, %s15
      %p172 = scmp.lt.s32.totalorder %s171, 7
      %s173 = scalar_select %p172, %s171, 7
      %s174 = smul.addr %s173, 5
      %s175 = smul.addr %s174, 8
      %s176 = scalar_lea.vmem %s0, %s175
      %s177 = smul.u32 4, %s15
      %p178 = scmp.lt.s32.totalorder %s15, 1
      %s179 = scalar_select %p178, %s15, 1
      %s180 = smul.addr %s179, 2
      %s181 = smul.addr %s180, 8
      %s182 = scalar_lea.vmem %s2, %s181
      %p183 = scmp.lt.s32.totalorder %s15, 1
      %s184 = scalar_select %p183, %s15, 1
      %s185 = smul.addr %s184, 2
      %s186 = scalar_lea.vmem %s3, %s185
      %v187 = vld [vmem:[%s176] sm:$0xf]
      %v188 = vld [vmem:[%s176 + $0x8] sm:$0xf]
      %v189 = vld [vmem:[%s176 + $0x10] sm:$0xf]
      %v190 = vld [vmem:[%s176 + $0x18] sm:$0xf]
      %s191 = scalar_lea.vmem %s176, 40
      %v192 = vld [vmem:[%s191] sm:$0xf]
      %v193 = vld [vmem:[%s191 + $0x8] sm:$0xf]
      %v194 = vld [vmem:[%s191 + $0x10] sm:$0xf]
      %v195 = vld [vmem:[%s191 + $0x18] sm:$0xf]
      %v196 = vld [vmem:[%s176 + $0x1] sm:$0xf]
      %v197 = vld [vmem:[%s176 + $0x9] sm:$0xf]
      %v198 = vld [vmem:[%s176 + $0x11] sm:$0xf]
      %v199 = vld [vmem:[%s176 + $0x19] sm:$0xf]
      %v200 = vld [vmem:[%s191 + $0x1] sm:$0xf]
      %v201 = vld [vmem:[%s191 + $0x9] sm:$0xf]
      %v202 = vld [vmem:[%s191 + $0x11] sm:$0xf]
      %v203 = vld [vmem:[%s191 + $0x19] sm:$0xf]
      %s204 = scalar_lea.vmem %s176, 80
      %v205 = vld [vmem:[%s204] sm:$0xf]
      %v206 = vld [vmem:[%s204 + $0x8] sm:$0xf]
      %v207 = vld [vmem:[%s204 + $0x10] sm:$0xf]
      %v208 = vld [vmem:[%s204 + $0x18] sm:$0xf]
      %s209 = scalar_lea.vmem %s176, 120
      %v210 = vld [vmem:[%s209] sm:$0xf]
      %v211 = vld [vmem:[%s209 + $0x8] sm:$0xf]
      %v212 = vld [vmem:[%s209 + $0x10] sm:$0xf]
      %v213 = vld [vmem:[%s209 + $0x18] sm:$0xf]
      %v214 = vld [vmem:[%s204 + $0x1] sm:$0xf]
      %v215 = vld [vmem:[%s204 + $0x9] sm:$0xf]
      %v216 = vld [vmem:[%s204 + $0x11] sm:$0xf]
      %v217 = vld [vmem:[%s204 + $0x19] sm:$0xf]
      %v218 = vld [vmem:[%s209 + $0x1] sm:$0xf]
      %v219 = vld [vmem:[%s209 + $0x9] sm:$0xf]
      %v220 = vld [vmem:[%s209 + $0x11] sm:$0xf]
      %v221 = vld [vmem:[%s209 + $0x19] sm:$0xf]
      %s222 = scalar_lea.vmem %s176, 8
      %v223 = vld [vmem:[%s222] sm:$0xf]
      %v224 = vld [vmem:[%s222 + $0x8] sm:$0xf]
      %v225 = vld [vmem:[%s222 + $0x10] sm:$0xf]
      %v226 = vld [vmem:[%s222 + $0x18] sm:$0xf]
      %s227 = scalar_lea.vmem %s176, 48
      %v228 = vld [vmem:[%s227] sm:$0xf]
      %v229 = vld [vmem:[%s227 + $0x8] sm:$0xf]
      %v230 = vld [vmem:[%s227 + $0x10] sm:$0xf]
      %v231 = vld [vmem:[%s227 + $0x18] sm:$0xf]
      %v232 = vld [vmem:[%s222 + $0x1] sm:$0xf]
      %v233 = vld [vmem:[%s222 + $0x9] sm:$0xf]
      %v234 = vld [vmem:[%s222 + $0x11] sm:$0xf]
      %v235 = vld [vmem:[%s222 + $0x19] sm:$0xf]
      %v236 = vld [vmem:[%s227 + $0x1] sm:$0xf]
      %v237 = vld [vmem:[%s227 + $0x9] sm:$0xf]
      %v238 = vld [vmem:[%s227 + $0x11] sm:$0xf]
      %v239 = vld [vmem:[%s227 + $0x19] sm:$0xf]
      %s240 = scalar_lea.vmem %s176, 88
      %v241 = vld [vmem:[%s240] sm:$0xf]
      %v242 = vld [vmem:[%s240 + $0x8] sm:$0xf]
      %v243 = vld [vmem:[%s240 + $0x10] sm:$0xf]
      %v244 = vld [vmem:[%s240 + $0x18] sm:$0xf]
      %s245 = scalar_lea.vmem %s176, 128
      %v246 = vld [vmem:[%s245] sm:$0xf]
      %v247 = vld [vmem:[%s245 + $0x8] sm:$0xf]
      %v248 = vld [vmem:[%s245 + $0x10] sm:$0xf]
      %v249 = vld [vmem:[%s245 + $0x18] sm:$0xf]
      %v250 = vld [vmem:[%s240 + $0x1] sm:$0xf]
      %v251 = vld [vmem:[%s240 + $0x9] sm:$0xf]
      %v252 = vld [vmem:[%s240 + $0x11] sm:$0xf]
      %v253 = vld [vmem:[%s240 + $0x19] sm:$0xf]
      %v254 = vld [vmem:[%s245 + $0x1] sm:$0xf]
      %v255 = vld [vmem:[%s245 + $0x9] sm:$0xf]
      %v256 = vld [vmem:[%s245 + $0x11] sm:$0xf]
      %v257 = vld [vmem:[%s245 + $0x19] sm:$0xf]
      %v262 = vcombine.low %v187, %v188
      %v263 = vcombine.low %v189, %v190
      %v270 = vcombine.low %v192, %v193
      %v271 = vcombine.low %v194, %v195
      %272 = vrot.lane.b32.xlu0 %v270, 8
      %v273 = vpop.permute.xlu0 %272
      %274 = vrot.lane.b32.xlu0 %v271, 8
      %v275 = vpop.permute.xlu0 %274
      %v282 = vcombine.low %v196, %v197
      %v283 = vcombine.low %v198, %v199
      %284 = vrot.lane.b32.xlu0 %v282, 16
      %v285 = vpop.permute.xlu0 %284
      %286 = vrot.lane.b32.xlu0 %v283, 16
      %v287 = vpop.permute.xlu0 %286
      %v294 = vcombine.low %v200, %v201
      %v295 = vcombine.low %v202, %v203
      %296 = vrot.lane.b32.xlu0 %v294, 24
      %v297 = vpop.permute.xlu0 %296
      %298 = vrot.lane.b32.xlu0 %v295, 24
      %v299 = vpop.permute.xlu0 %298
      %v306 = vcombine.low %v205, %v206
      %v307 = vcombine.low %v207, %v208
      %308 = vrot.lane.b32.xlu0 %v306, 32
      %v309 = vpop.permute.xlu0 %308
      %310 = vrot.lane.b32.xlu0 %v307, 32
      %v311 = vpop.permute.xlu0 %310
      %v318 = vcombine.low %v210, %v211
      %v319 = vcombine.low %v212, %v213
      %320 = vrot.lane.b32.xlu0 %v318, 40
      %v321 = vpop.permute.xlu0 %320
      %322 = vrot.lane.b32.xlu0 %v319, 40
      %v323 = vpop.permute.xlu0 %322
      %v330 = vcombine.low %v214, %v215
      %v331 = vcombine.low %v216, %v217
      %332 = vrot.lane.b32.xlu0 %v330, 48
      %v333 = vpop.permute.xlu0 %332
      %334 = vrot.lane.b32.xlu0 %v331, 48
      %v335 = vpop.permute.xlu0 %334
      %v342 = vcombine.low %v218, %v219
      %v343 = vcombine.low %v220, %v221
      %344 = vrot.lane.b32.xlu0 %v342, 56
      %v345 = vpop.permute.xlu0 %344
      %346 = vrot.lane.b32.xlu0 %v343, 56
      %v347 = vpop.permute.xlu0 %346
      %v354 = vcombine.low %v223, %v224
      %v355 = vcombine.low %v225, %v226
      %356 = vrot.lane.b32.xlu0 %v354, 64
      %v357 = vpop.permute.xlu0 %356
      %358 = vrot.lane.b32.xlu0 %v355, 64
      %v359 = vpop.permute.xlu0 %358
      %v366 = vcombine.low %v228, %v229
      %v367 = vcombine.low %v230, %v231
      %368 = vrot.lane.b32.xlu0 %v366, 72
      %v369 = vpop.permute.xlu0 %368
      %370 = vrot.lane.b32.xlu0 %v367, 72
      %v371 = vpop.permute.xlu0 %370
      %v378 = vcombine.low %v232, %v233
      %v379 = vcombine.low %v234, %v235
      %380 = vrot.lane.b32.xlu0 %v378, 80
      %v381 = vpop.permute.xlu0 %380
      %382 = vrot.lane.b32.xlu0 %v379, 80
      %v383 = vpop.permute.xlu0 %382
      %v390 = vcombine.low %v236, %v237
      %v391 = vcombine.low %v238, %v239
      %392 = vrot.lane.b32.xlu0 %v390, 88
      %v393 = vpop.permute.xlu0 %392
      %394 = vrot.lane.b32.xlu0 %v391, 88
      %v395 = vpop.permute.xlu0 %394
      %v402 = vcombine.low %v241, %v242
      %v403 = vcombine.low %v243, %v244
      %404 = vrot.lane.b32.xlu0 %v402, 96
      %v405 = vpop.permute.xlu0 %404
      %406 = vrot.lane.b32.xlu0 %v403, 96
      %v407 = vpop.permute.xlu0 %406
      %v414 = vcombine.low %v246, %v247
      %v415 = vcombine.low %v248, %v249
      %416 = vrot.lane.b32.xlu0 %v414, 104
      %v417 = vpop.permute.xlu0 %416
      %418 = vrot.lane.b32.xlu0 %v415, 104
      %v419 = vpop.permute.xlu0 %418
      %v426 = vcombine.low %v250, %v251
      %v427 = vcombine.low %v252, %v253
      %428 = vrot.lane.b32.xlu0 %v426, 112
      %v429 = vpop.permute.xlu0 %428
      %430 = vrot.lane.b32.xlu0 %v427, 112
      %v431 = vpop.permute.xlu0 %430
      %v438 = vcombine.low %v254, %v255
      %v439 = vcombine.low %v256, %v257
      %440 = vrot.lane.b32.xlu0 %v438, 120
      %v441 = vpop.permute.xlu0 %440
      %442 = vrot.lane.b32.xlu0 %v439, 120
      %v443 = vpop.permute.xlu0 %442
      %vm446 = vcmask 64512
      %v447 = vsel %vm446, %v262, %v273
      %v448 = vsel %vm446, %v263, %v275
      %vm449 = vcmask 130048
      %v450 = vsel %vm449, %v447, %v285
      %v451 = vsel %vm449, %v448, %v287
      %vm452 = vcmask 195584
      %v453 = vsel %vm452, %v450, %v297
      %v454 = vsel %vm452, %v451, %v299
      %vm455 = vcmask 261120
      %v456 = vsel %vm455, %v453, %v309
      %v457 = vsel %vm455, %v454, %v311
      %vm458 = vcmask 326656
      %v459 = vsel %vm458, %v456, %v321
      %v460 = vsel %vm458, %v457, %v323
      %vm461 = vcmask 392192
      %v462 = vsel %vm461, %v459, %v333
      %v463 = vsel %vm461, %v460, %v335
      %vm464 = vcmask 457728
      %v465 = vsel %vm464, %v462, %v345
      %v466 = vsel %vm464, %v463, %v347
      %vm467 = vcmask 523264
      %v468 = vsel %vm467, %v465, %v357
      %v469 = vsel %vm467, %v466, %v359
      %vm470 = vcmask 588800
      %v471 = vsel %vm470, %v468, %v369
      %v472 = vsel %vm470, %v469, %v371
      %vm473 = vcmask 654336
      %v474 = vsel %vm473, %v471, %v381
      %v475 = vsel %vm473, %v472, %v383
      %vm476 = vcmask 719872
      %v477 = vsel %vm476, %v474, %v393
      %v478 = vsel %vm476, %v475, %v395
      %vm479 = vcmask 785408
      %v480 = vsel %vm479, %v477, %v405
      %v481 = vsel %vm479, %v478, %v407
      %vm482 = vcmask 850944
      %v483 = vsel %vm482, %v480, %v417
      %v484 = vsel %vm482, %v481, %v419
      %vm485 = vcmask 916480
      %v486 = vsel %vm485, %v483, %v429
      %v487 = vsel %vm485, %v484, %v431
      %vm488 = vcmask 982016
      %v489 = vsel %vm488, %v486, %v441
      %v490 = vsel %vm488, %v487, %v443
      %v491 = vld [vmem:[%s1] sm:$0xff]
      %v492 = vld [vmem:[%s1 + $0x8] sm:$0xff]
      %v493 = vld [vmem:[%s1 + $0x10] sm:$0xff]
      %v494 = vld [vmem:[%s1 + $0x18] sm:$0xff]
      %v495 = vld [vmem:[%s1 + $0x20] sm:$0xff]
      %v496 = vld [vmem:[%s1 + $0x28] sm:$0xff]
      %v497 = vld [vmem:[%s1 + $0x30] sm:$0xff]
      %v498 = vld [vmem:[%s1 + $0x38] sm:$0xff]
      %v499 = vld [vmem:[%s1 + $0x40] sm:$0xff]
      %v500 = vld [vmem:[%s1 + $0x48] sm:$0xff]
      %v501 = vld [vmem:[%s1 + $0x50] sm:$0xff]
      %v502 = vld [vmem:[%s1 + $0x58] sm:$0xff]
      %v503 = vld [vmem:[%s1 + $0x60] sm:$0xff]
      %v504 = vld [vmem:[%s1 + $0x68] sm:$0xff]
      %v505 = vld [vmem:[%s1 + $0x70] sm:$0xff]
      %v506 = vld [vmem:[%s1 + $0x78] sm:$0xff]
      %507 = vmatprep.subr.mxu0 0.0
      %508 = vmatpush1.msra.mxu0 %v506
      %509 = vmatprep.subr.mxu0 0.0
      %510 = vmatpush1.msra.mxu0 %v505
      %511 = vmatprep.subr.mxu0 0.0
      %512 = vmatpush1.msra.mxu0 %v504
      %513 = vmatprep.subr.mxu0 0.0
      %514 = vmatpush1.msra.mxu0 %v503
      %515 = vmatprep.subr.mxu0 0.0
      %516 = vmatpush1.msra.mxu0 %v502
      %517 = vmatprep.subr.mxu0 0.0
      %518 = vmatpush1.msra.mxu0 %v501
      %519 = vmatprep.subr.mxu0 0.0
      %520 = vmatpush1.msra.mxu0 %v500
      %521 = vmatprep.subr.mxu0 0.0
      %522 = vmatpush1.msra.mxu0 %v499
      %523 = vmatprep.subr.mxu0 0.0
      %524 = vmatpush1.msra.mxu0 %v498
      %525 = vmatprep.subr.mxu0 0.0
      %526 = vmatpush1.msra.mxu0 %v497
      %527 = vmatprep.subr.mxu0 0.0
      %528 = vmatpush1.msra.mxu0 %v496
      %529 = vmatprep.subr.mxu0 0.0
      %530 = vmatpush1.msra.mxu0 %v495
      %531 = vmatprep.subr.mxu0 0.0
      %532 = vmatpush1.msra.mxu0 %v494
      %533 = vmatprep.subr.mxu0 0.0
      %534 = vmatpush1.msra.mxu0 %v493
      %535 = vmatprep.subr.mxu0 0.0
      %536 = vmatpush1.msra.mxu0 %v492
      %537 = vmatprep.subr.mxu0 0.0
      %538 = vmatpush1.msra.mxu0 %v491
      %539 = vmatprep.subr.mxu0 0.0
      %540 = vmatpush2.msra.mxu0 0.0
      %541 = vmatprep.subr.mxu0 0.0
      %542 = vmatpush2.msra.mxu0 0.0
      %543 = vmatprep.subr.mxu0 0.0
      %544 = vmatpush2.msra.mxu0 0.0
      %545 = vmatprep.subr.mxu0 0.0
      %546 = vmatpush2.msra.mxu0 0.0
      %547 = vmatprep.subr.mxu0 0.0
      %548 = vmatpush2.msra.mxu0 0.0
      %549 = vmatprep.subr.mxu0 0.0
      %550 = vmatpush2.msra.mxu0 0.0
      %551 = vmatprep.subr.mxu0 0.0
      %552 = vmatpush2.msra.mxu0 0.0
      %553 = vmatprep.subr.mxu0 0.0
      %554 = vmatpush2.msra.mxu0 0.0
      %555 = vmatprep.subr.mxu0 0.0
      %556 = vmatpush2.msra.mxu0 0.0
      %557 = vmatprep.subr.mxu0 0.0
      %558 = vmatpush2.msra.mxu0 0.0
      %559 = vmatprep.subr.mxu0 0.0
      %560 = vmatpush2.msra.mxu0 0.0
      %561 = vmatprep.subr.mxu0 0.0
      %562 = vmatpush2.msra.mxu0 0.0
      %563 = vmatprep.subr.mxu0 0.0
      %564 = vmatpush2.msra.mxu0 0.0
      %565 = vmatprep.subr.mxu0 0.0
      %566 = vmatpush2.msra.mxu0 0.0
      %567 = vmatprep.subr.mxu0 0.0
      %568 = vmatpush2.msra.mxu0 0.0
      %569 = vmatprep.subr.mxu0 0.0
      %570 = vmatpush2.msra.mxu0 0.0
      %571 = vmatprep.mubr.f32.mxu0 0.0
      %572 = vmatmul.mubr.f32.gmra.mxu0 %v489
      %v573 = vpop.f32.mrf.mxu0
      %v574 = vadd.f32 0.0, %v573
      %v575 = vpop.f32.mrf.mxu0
      %576 = vmatprep.mubr.f32.mxu0 0.0
      %577 = vmatmul.mubr.f32.gmra.mxu0 %v490
      %v578 = vpop.f32.mrf.mxu0
      %v579 = vadd.f32 0.0, %v578
      %v580 = vpop.f32.mrf.mxu0
      %581 = vdwg.mxu0
      %582 = vst.msk [vmem:[%s182] sm:$0xff] %vm449, %v574
      %583 = vst.msk [vmem:[%s182 + $0x8] sm:$0xff] %vm449, %v579
      %v584 = vsel %vm449, %v574, 0.0
      %v585 = vsel %vm449, %v579, 0.0
      %v586 = vadd.f32 %v584, %v585
      %v587 = vrot.slane %v586, 4
      %v588 = vadd.f32 %v586, %v587
      %v589 = vrot.slane %v588, 2
      %v590 = vadd.f32 %v588, %v589
      %v591 = vrot.slane %v590, 1
      %v592 = vadd.f32 %v590, %v591
      %v593 = vmul.f32 %v574, %v574
      %v594 = vmul.f32 %v579, %v579
      %v595 = vsel %vm449, %v593, 0.0
      %v596 = vsel %vm449, %v594, 0.0
      %v597 = vadd.f32 %v595, %v596
      %v598 = vrot.slane %v597, 4
      %v599 = vadd.f32 %v597, %v598
      %v600 = vrot.slane %v599, 2
      %v601 = vadd.f32 %v599, %v600
      %v602 = vrot.slane %v601, 1
      %v603 = vadd.f32 %v601, %v602
      %vm604 = vcmask 1040384
      %v605 = vsel %vm604, %v592, %v603
      %vm606 = vcmask 123904
      %607 = vst.msk [vmem:[%s186] sm:$0x3] %vm606, %v605
      %p608 = scmp.lt.s32.totalorder %s15, 1
      %s609 = scalar_select %p608, %s15, 1
      %s610 = smul.addr %s609, 2
      %s611 = smul.addr %s610, 8
      %s612 = scalar_lea.vmem %s2, %s611
      %p613 = scmp.lt.s32.totalorder %s15, 1
      %s614 = scalar_select %p613, %s15, 1
      %s615 = smul.addr %s614, 2
      %s616 = scalar_lea.vmem %s3, %s615
      // Predicated region
      $region29: #{_vae_encoder_forward.4} parent=27 // pred_check
        %p617 = pneg %p80
      $region30: #{_vae_encoder_forward.4} parent=27 // pred_check_branch
        %619 = sbr.rel (%p617) target = $region32
      $region31: #{_vae_encoder_forward.4} parent=27 // pred_region
        _
      $region32: #{_vae_encoder_forward.4} parent=27 // pred_fallthru
        _
      // Predicated region
      $region33: #{_vae_encoder_forward.4} parent=27 // pred_check
        %p620 = pneg %p106
      $region34: #{_vae_encoder_forward.4} parent=27 // pred_check_branch
        %622 = sbr.rel (%p620) target = $region36
      $region35: #{_vae_encoder_forward.4} parent=27 // pred_region
        _
      $region36: #{_vae_encoder_forward.4} parent=27 // pred_fallthru
        _
    $region28: #{_vae_encoder_forward.4} parent=5 // pred_fallthru
      _
    %p623 = scmp.le.s32.totalorder 2, %s10
    // Predicated region
    $region37: #{_vae_encoder_forward.4} parent=5 // pred_check
      %p624 = pneg %p623
    $region38: #{_vae_encoder_forward.4} parent=5 // pred_check_branch
      %626 = sbr.rel (%p624) target = $region40
    $region39: #{_vae_encoder_forward.4} parent=5 // pred_region
      %s627 = ssub.s32 %s10, 2
      // Predicated region
      $region41: #{_vae_encoder_forward.4} parent=39 // pred_check
        %p628 = pneg %p86
      $region42: #{_vae_encoder_forward.4} parent=39 // pred_check_branch
        %630 = sbr.rel (%p628) target = $region44
      $region43: #{_vae_encoder_forward.4} parent=39 // pred_region
        %p631 = scmp.lt.s32.totalorder %s16, 1
        %s632 = scalar_select %p631, %s16, 1
        %s633 = smul.addr %s632, 2
        %s634 = smul.addr %s633, 8
        %s635 = scalar_lea.vmem %s2, %s634
      $region44: #{_vae_encoder_forward.4} parent=39 // pred_fallthru
        _
      // Predicated region
      $region45: #{_vae_encoder_forward.4} parent=39 // pred_check
        %p636 = pneg %p112
      $region46: #{_vae_encoder_forward.4} parent=39 // pred_check_branch
        %638 = sbr.rel (%p636) target = $region48
      $region47: #{_vae_encoder_forward.4} parent=39 // pred_region
        %p639 = scmp.lt.s32.totalorder %s16, 1
        %s640 = scalar_select %p639, %s16, 1
        %s641 = smul.addr %s640, 2
        %s642 = scalar_lea.vmem %s3, %s641
      $region48: #{_vae_encoder_forward.4} parent=39 // pred_fallthru
        _
    $region40: #{_vae_encoder_forward.4} parent=5 // pred_fallthru
      _
  $region6: #{_vae_encoder_forward.4} parent=0 // loop_footer
    %s14 = sadd.s32 1, %s10
  $region7: #{_vae_encoder_forward.4} parent=0 // loop_footer_branch
    %9 = sbr.rel target = $region3
  $region8: #{_vae_encoder_forward.4} parent=0 // loop_exit
    _

// kernel: _vae_encoder_forward.3
$region0: #{_vae_encoder_forward.3}
  #allocation0 [shape = 'u32[]', space=smem, size = 0x4, offset = 0x4, fixed_abs, tag = 'smem constant byte address 0x4 - core index']
  #allocation1 [shape = 'u32[144,128]{1,0:T(1,128)}', space=vmem, size = 0x12000, scoped, tag = 'internal scratch']
  %s0 = inlined_call_operand.vmem [shape: f32[8,9,9,4], index: 0, kind: input, shape index: {}]
  %s1 = inlined_call_operand.vmem [shape: f32[64,8], index: 1, kind: input, shape index: {}]
  %s2 = inlined_call_operand.vmem [shape: f32[2,64,8], index: 2, kind: output, shape index: {0}]
  %s3 = inlined_call_operand.vmem [shape: f32[2,2,8], index: 3, kind: output, shape index: {1}]
  %4 = xla_tuple %s2, %s3
  %s5 = sld [smem:[#allocation0]]
  $region49: #{_vae_encoder_forward.3} parent=0
    _
  %s7 = ssub.s32 1, %s5
  %s8 = scalar_select 0, %s7, %s5
  loop: start=0, step=1, limit=4
  $region2: #{_vae_encoder_forward.3} parent=0 // loop_pre_header
    _
  $region3: #{_vae_encoder_forward.3} parent=0 // loop_header
    %s10 = sphi 0, %s14
    %p11 = scmp.ge.s32.totalorder %s10, 4
    %s20 = sphi 0, %s22
    %s23 = sphi 0, %s20
    %s24 = sphi 0, %s23
    %s40 = sphi 0, %s24
    %s44 = sphi 0, %s44
    %s46 = sphi 0, %s44
    %s47 = sphi 0, %s46
    %s61 = sphi 0, %s47
    %s67 = sphi 0, %s69
    %s70 = sphi 0, %s67
    %s71 = sphi 0, %s70
    %s87 = sphi 0, %s71
    %s93 = sphi 0, %s95
    %s96 = sphi 0, %s93
    %s97 = sphi 0, %s96
    %s113 = sphi 0, %s97
  $region4: #{_vae_encoder_forward.3} parent=0 // loop_header_branch
    %13 = sbr.rel (%p11) target = $region8
  $region5: #{_vae_encoder_forward.3} parent=0 // loop_body
    %s15 = ssub.s32 %s10, 1
    %s16 = ssub.s32 %s10, 2
    %s17 = sadd.s32 %s10, 1
    %s18 = ssub.s32 %s10, %s17
    %p19 = scmp.eq.s32.totalorder %s18, 0
    %s21 = sadd.s32 %s20, 1
    %s22 = scalar_select %p19, %s20, %s21
    %p25 = pneg %p19
    %p26 = scmp.eq.s32.totalorder %s10, 1
    %p27 = por %p25, %p26
    %p28 = scmp.ne.s32.totalorder %s20, %s23
    %p29 = scmp.eq.s32.totalorder %s10, 0
    %p30 = por %p28, %p29
    %p31 = scmp.ne.s32.totalorder %s20, %s23
    %p32 = scmp.eq.s32.totalorder %s15, 1
    %p33 = por %p31, %p32
    %p34 = scmp.ne.s32.totalorder %s23, %s24
    %p35 = scmp.eq.s32.totalorder %s15, 0
    %p36 = por %p34, %p35
    %p37 = scmp.ne.s32.totalorder %s23, %s24
    %p38 = scmp.eq.s32.totalorder %s16, 1
    %p39 = por %p37, %p38
    %p41 = scmp.ne.s32.totalorder %s24, %s40
    %p42 = scmp.eq.s32.totalorder %s16, 0
    %p43 = por %p41, %p42
    %s45 = sadd.s32 %s44, 1
    %p48 = scmp.eq.s32.totalorder %s10, 1
    %p49 = scmp.ne.s32.totalorder %s44, %s46
    %p50 = scmp.eq.s32.totalorder %s10, 0
    %p51 = por %p49, %p50
    %p52 = scmp.ne.s32.totalorder %s44, %s46
    %p53 = scmp.eq.s32.totalorder %s15, 1
    %p54 = por %p52, %p53
    %p55 = scmp.ne.s32.totalorder %s46, %s47
    %p56 = scmp.eq.s32.totalorder %s15, 0
    %p57 = por %p55, %p56
    %p58 = scmp.ne.s32.totalorder %s46, %s47
    %p59 = scmp.eq.s32.totalorder %s16, 1
    %p60 = por %p58, %p59
    %p62 = scmp.ne.s32.totalorder %s47, %s61
    %p63 = scmp.eq.s32.totalorder %s16, 0
    %p64 = por %p62, %p63
    %s65 = ssub.s32 %s10, %s17
    %p66 = scmp.eq.s32.totalorder %s65, 0
    %s68 = sadd.s32 %s67, 1
    %s69 = scalar_select %p66, %s67, %s68
    %p72 = pneg %p66
    %p73 = scmp.eq.s32.totalorder %s10, 1
    %p74 = por %p72, %p73
    %p75 = scmp.ne.s32.totalorder %s67, %s70
    %p76 = scmp.eq.s32.totalorder %s10, 0
    %p77 = por %p75, %p76
    %p78 = scmp.ne.s32.totalorder %s67, %s70
    %p79 = scmp.eq.s32.totalorder %s15, 1
    %p80 = por %p78, %p79
    %p81 = scmp.ne.s32.totalorder %s70, %s71
    %p82 = scmp.eq.s32.totalorder %s15, 0
    %p83 = por %p81, %p82
    %p84 = scmp.ne.s32.totalorder %s70, %s71
    %p85 = scmp.eq.s32.totalorder %s16, 1
    %p86 = por %p84, %p85
    %p88 = scmp.ne.s32.totalorder %s71, %s87
    %p89 = scmp.eq.s32.totalorder %s16, 0
    %p90 = por %p88, %p89
    %s91 = ssub.s32 %s10, %s17
    %p92 = scmp.eq.s32.totalorder %s91, 0
    %s94 = sadd.s32 %s93, 1
    %s95 = scalar_select %p92, %s93, %s94
    %p98 = pneg %p92
    %p99 = scmp.eq.s32.totalorder %s10, 1
    %p100 = por %p98, %p99
    %p101 = scmp.ne.s32.totalorder %s93, %s96
    %p102 = scmp.eq.s32.totalorder %s10, 0
    %p103 = por %p101, %p102
    %p104 = scmp.ne.s32.totalorder %s93, %s96
    %p105 = scmp.eq.s32.totalorder %s15, 1
    %p106 = por %p104, %p105
    %p107 = scmp.ne.s32.totalorder %s96, %s97
    %p108 = scmp.eq.s32.totalorder %s15, 0
    %p109 = por %p107, %p108
    %p110 = scmp.ne.s32.totalorder %s96, %s97
    %p111 = scmp.eq.s32.totalorder %s16, 1
    %p112 = por %p110, %p111
    %p114 = scmp.ne.s32.totalorder %s97, %s113
    %p115 = scmp.eq.s32.totalorder %s16, 0
    %p116 = por %p114, %p115
    %p117 = scmp.le.s32.totalorder 1, %s10
    %p118 = scmp.lt.s32.totalorder %s10, 3
    %p119 = pnand %p117, %p118
    %p120 = pneg %p119
    // Predicated region
    $region9: #{_vae_encoder_forward.3} parent=5 // pred_check
      _
    $region10: #{_vae_encoder_forward.3} parent=5 // pred_check_branch
      %122 = sbr.rel (%p119) target = $region12
    $region11: #{_vae_encoder_forward.3} parent=5 // pred_region
      %s123 = ssub.s32 %s10, 1
      // Predicated region
      $region13: #{_vae_encoder_forward.3} parent=11 // pred_check
        %p124 = pneg %p57
      $region14: #{_vae_encoder_forward.3} parent=11 // pred_check_branch
        %126 = sbr.rel (%p124) target = $region16
      $region15: #{_vae_encoder_forward.3} parent=11 // pred_region
        _
      $region16: #{_vae_encoder_forward.3} parent=11 // pred_fallthru
        _
    $region12: #{_vae_encoder_forward.3} parent=5 // pred_fallthru
      _
    %p127 = scmp.lt.s32.totalorder %s10, 2
    // Predicated region
    $region17: #{_vae_encoder_forward.3} parent=5 // pred_check
      %p128 = pneg %p127
    $region18: #{_vae_encoder_forward.3} parent=5 // pred_check_branch
      %130 = sbr.rel (%p128) target = $region20
    $region19: #{_vae_encoder_forward.3} parent=5 // pred_region
      // Predicated region
      $region21: #{_vae_encoder_forward.3} parent=19 // pred_check
        %p131 = pneg %p30
      $region22: #{_vae_encoder_forward.3} parent=19 // pred_check_branch
        %133 = sbr.rel (%p131) target = $region24
      $region23: #{_vae_encoder_forward.3} parent=19 // pred_region
        %s134 = smul.u32 4, %s10
        %p135 = scmp.lt.s32.totalorder %s134, 7
        %s136 = scalar_select %p135, %s134, 7
        %s137 = smul.addr %s136, 18
        %s138 = smul.addr %s137, 8
        %s139 = scalar_lea.vmem %s0, %s138
        %s140 = smul.u32 4, %s10
      $region24: #{_vae_encoder_forward.3} parent=19 // pred_fallthru
        _
    $region20: #{_vae_encoder_forward.3} parent=5 // pred_fallthru
      _
    %p141 = scmp.le.s32.totalorder 1, %s10
    %p142 = scmp.lt.s32.totalorder %s10, 3
    %p143 = pnand %p141, %p142
    %p144 = pneg %p143
    // Predicated region
    $region25: #{_vae_encoder_forward.3} parent=5 // pred_check
      _
    $region26: #{_vae_encoder_forward.3} parent=5 // pred_check_branch
      %146 = sbr.rel (%p143) target = $region28
    $region27: #{_vae_encoder_forward.3} parent=5 // pred_region
      %s147 = ssub.s32 %s10, 1
      %s148 = smul.u32 4, %s15
      %p149 = scmp.lt.s32.totalorder %s148, 7
      %s150 = scalar_select %p149, %s148, 7
      %s151 = smul.addr %s150, 18
      %s152 = smul.addr %s151, 8
      %s153 = scalar_lea.vmem %s0, %s152
      %p154 = pneg %p36
      %p155 = pneg %p33
      %p156 = pneg %p57
      %p157 = pneg %p54
      %p158 = pneg %p83
      %p159 = pneg %p80
      %p160 = scmp.lt.s32.totalorder %s15, 1
      %s161 = scalar_select %p160, %s15, 1
      %s162 = smul.addr %s161, 8
      %s163 = smul.addr %s162, 8
      %s164 = scalar_lea.vmem %s2, %s163
      %p165 = pneg %p109
      %p166 = pneg %p106
      %p167 = scmp.lt.s32.totalorder %s15, 1
      %s168 = scalar_select %p167, %s15, 1
      %s169 = smul.addr %s168, 2
      %s170 = scalar_lea.vmem %s3, %s169
      %s171 = smul.u32 4, %s15
      %p172 = scmp.lt.s32.totalorder %s171, 7
      %s173 = scalar_select %p172, %s171, 7
      %s174 = smul.addr %s173, 18
      %s175 = smul.addr %s174, 8
      %s176 = scalar_lea.vmem %s0, %s175
      %s177 = smul.u32 4, %s15
      %p178 = scmp.lt.s32.totalorder %s15, 1
      %s179 = scalar_select %p178, %s15, 1
      %s180 = smul.addr %s179, 8
      %s181 = smul.addr %s180, 8
      %s182 = scalar_lea.vmem %s2, %s181
      %p183 = scmp.lt.s32.totalorder %s15, 1
      %s184 = scalar_select %p183, %s15, 1
      %s185 = smul.addr %s184, 2
      %s186 = scalar_lea.vmem %s3, %s185
      %v187 = vld [vmem:[%s176] sm:$0xff]
      %v188 = vld [vmem:[%s176 + $0x10] sm:$0xff]
      %v189 = vld [vmem:[%s176 + $0x20] sm:$0xff]
      %v190 = vld [vmem:[%s176 + $0x30] sm:$0xff]
      %v191 = vld [vmem:[%s176 + $0x40] sm:$0xff]
      %v192 = vld [vmem:[%s176 + $0x50] sm:$0xff]
      %v193 = vld [vmem:[%s176 + $0x60] sm:$0xff]
      %v194 = vld [vmem:[%s176 + $0x70] sm:$0xff]
      %s195 = scalar_lea.vmem %s176, 144
      %v196 = vld [vmem:[%s195] sm:$0xff]
      %v197 = vld [vmem:[%s195 + $0x10] sm:$0xff]
      %v198 = vld [vmem:[%s195 + $0x20] sm:$0xff]
      %v199 = vld [vmem:[%s195 + $0x30] sm:$0xff]
      %v200 = vld [vmem:[%s195 + $0x40] sm:$0xff]
      %v201 = vld [vmem:[%s195 + $0x50] sm:$0xff]
      %v202 = vld [vmem:[%s195 + $0x60] sm:$0xff]
      %v203 = vld [vmem:[%s195 + $0x70] sm:$0xff]
      %v204 = vld [vmem:[%s176 + $0x1] sm:$0xff]
      %v205 = vld [vmem:[%s176 + $0x11] sm:$0xff]
      %v206 = vld [vmem:[%s176 + $0x21] sm:$0xff]
      %v207 = vld [vmem:[%s176 + $0x31] sm:$0xff]
      %v208 = vld [vmem:[%s176 + $0x41] sm:$0xff]
      %v209 = vld [vmem:[%s176 + $0x51] sm:$0xff]
      %v210 = vld [vmem:[%s176 + $0x61] sm:$0xff]
      %v211 = vld [vmem:[%s176 + $0x71] sm:$0xff]
      %v212 = vld [vmem:[%s195 + $0x1] sm:$0xff]
      %v213 = vld [vmem:[%s195 + $0x11] sm:$0xff]
      %v214 = vld [vmem:[%s195 + $0x21] sm:$0xff]
      %v215 = vld [vmem:[%s195 + $0x31] sm:$0xff]
      %v216 = vld [vmem:[%s195 + $0x41] sm:$0xff]
      %v217 = vld [vmem:[%s195 + $0x51] sm:$0xff]
      %v218 = vld [vmem:[%s195 + $0x61] sm:$0xff]
      %v219 = vld [vmem:[%s195 + $0x71] sm:$0xff]
      %s220 = scalar_lea.vmem %s176, 288
      %v221 = vld [vmem:[%s220] sm:$0xff]
      %v222 = vld [vmem:[%s220 + $0x10] sm:$0xff]
      %v223 = vld [vmem:[%s220 + $0x20] sm:$0xff]
      %v224 = vld [vmem:[%s220 + $0x30] sm:$0xff]
      %v225 = vld [vmem:[%s220 + $0x40] sm:$0xff]
      %v226 = vld [vmem:[%s220 + $0x50] sm:$0xff]
      %v227 = vld [vmem:[%s220 + $0x60] sm:$0xff]
      %v228 = vld [vmem:[%s220 + $0x70] sm:$0xff]
      %s229 = scalar_lea.vmem %s176, 432
      %v230 = vld [vmem:[%s229] sm:$0xff]
      %v231 = vld [vmem:[%s229 + $0x10] sm:$0xff]
      %v232 = vld [vmem:[%s229 + $0x20] sm:$0xff]
      %v233 = vld [vmem:[%s229 + $0x30] sm:$0xff]
      %v234 = vld [vmem:[%s229 + $0x40] sm:$0xff]
      %v235 = vld [vmem:[%s229 + $0x50] sm:$0xff]
      %v236 = vld [vmem:[%s229 + $0x60] sm:$0xff]
      %v237 = vld [vmem:[%s229 + $0x70] sm:$0xff]
      %v238 = vld [vmem:[%s220 + $0x1] sm:$0xff]
      %v239 = vld [vmem:[%s220 + $0x11] sm:$0xff]
      %v240 = vld [vmem:[%s220 + $0x21] sm:$0xff]
      %v241 = vld [vmem:[%s220 + $0x31] sm:$0xff]
      %v242 = vld [vmem:[%s220 + $0x41] sm:$0xff]
      %v243 = vld [vmem:[%s220 + $0x51] sm:$0xff]
      %v244 = vld [vmem:[%s220 + $0x61] sm:$0xff]
      %v245 = vld [vmem:[%s220 + $0x71] sm:$0xff]
      %v246 = vld [vmem:[%s229 + $0x1] sm:$0xff]
      %v247 = vld [vmem:[%s229 + $0x11] sm:$0xff]
      %v248 = vld [vmem:[%s229 + $0x21] sm:$0xff]
      %v249 = vld [vmem:[%s229 + $0x31] sm:$0xff]
      %v250 = vld [vmem:[%s229 + $0x41] sm:$0xff]
      %v251 = vld [vmem:[%s229 + $0x51] sm:$0xff]
      %v252 = vld [vmem:[%s229 + $0x61] sm:$0xff]
      %v253 = vld [vmem:[%s229 + $0x71] sm:$0xff]
      %s254 = scalar_lea.vmem %s176, 16
      %v255 = vld [vmem:[%s254] sm:$0xff]
      %v256 = vld [vmem:[%s254 + $0x10] sm:$0xff]
      %v257 = vld [vmem:[%s254 + $0x20] sm:$0xff]
      %v258 = vld [vmem:[%s254 + $0x30] sm:$0xff]
      %v259 = vld [vmem:[%s254 + $0x40] sm:$0xff]
      %v260 = vld [vmem:[%s254 + $0x50] sm:$0xff]
      %v261 = vld [vmem:[%s254 + $0x60] sm:$0xff]
      %v262 = vld [vmem:[%s254 + $0x70] sm:$0xff]
      %s263 = scalar_lea.vmem %s176, 160
      %v264 = vld [vmem:[%s263] sm:$0xff]
      %v265 = vld [vmem:[%s263 + $0x10] sm:$0xff]
      %v266 = vld [vmem:[%s263 + $0x20] sm:$0xff]
      %v267 = vld [vmem:[%s263 + $0x30] sm:$0xff]
      %v268 = vld [vmem:[%s263 + $0x40] sm:$0xff]
      %v269 = vld [vmem:[%s263 + $0x50] sm:$0xff]
      %v270 = vld [vmem:[%s263 + $0x60] sm:$0xff]
      %v271 = vld [vmem:[%s263 + $0x70] sm:$0xff]
      %v272 = vld [vmem:[%s254 + $0x1] sm:$0xff]
      %v273 = vld [vmem:[%s254 + $0x11] sm:$0xff]
      %v274 = vld [vmem:[%s254 + $0x21] sm:$0xff]
      %v275 = vld [vmem:[%s254 + $0x31] sm:$0xff]
      %v276 = vld [vmem:[%s254 + $0x41] sm:$0xff]
      %v277 = vld [vmem:[%s254 + $0x51] sm:$0xff]
      %v278 = vld [vmem:[%s254 + $0x61] sm:$0xff]
      %v279 = vld [vmem:[%s254 + $0x71] sm:$0xff]
      %v280 = vld [vmem:[%s263 + $0x1] sm:$0xff]
      %v281 = vld [vmem:[%s263 + $0x11] sm:$0xff]
      %v282 = vld [vmem:[%s263 + $0x21] sm:$0xff]
      %v283 = vld [vmem:[%s263 + $0x31] sm:$0xff]
      %v284 = vld [vmem:[%s263 + $0x41] sm:$0xff]
      %v285 = vld [vmem:[%s263 + $0x51] sm:$0xff]
      %v286 = vld [vmem:[%s263 + $0x61] sm:$0xff]
      %v287 = vld [vmem:[%s263 + $0x71] sm:$0xff]
      %s288 = scalar_lea.vmem %s176, 304
      %v289 = vld [vmem:[%s288] sm:$0xff]
      %v290 = vld [vmem:[%s288 + $0x10] sm:$0xff]
      %v291 = vld [vmem:[%s288 + $0x20] sm:$0xff]
      %v292 = vld [vmem:[%s288 + $0x30] sm:$0xff]
      %v293 = vld [vmem:[%s288 + $0x40] sm:$0xff]
      %v294 = vld [vmem:[%s288 + $0x50] sm:$0xff]
      %v295 = vld [vmem:[%s288 + $0x60] sm:$0xff]
      %v296 = vld [vmem:[%s288 + $0x70] sm:$0xff]
      %s297 = scalar_lea.vmem %s176, 448
      %v298 = vld [vmem:[%s297] sm:$0xff]
      %v299 = vld [vmem:[%s297 + $0x10] sm:$0xff]
      %v300 = vld [vmem:[%s297 + $0x20] sm:$0xff]
      %v301 = vld [vmem:[%s297 + $0x30] sm:$0xff]
      %v302 = vld [vmem:[%s297 + $0x40] sm:$0xff]
      %v303 = vld [vmem:[%s297 + $0x50] sm:$0xff]
      %v304 = vld [vmem:[%s297 + $0x60] sm:$0xff]
      %v305 = vld [vmem:[%s297 + $0x70] sm:$0xff]
      %v306 = vld [vmem:[%s288 + $0x1] sm:$0xff]
      %v307 = vld [vmem:[%s288 + $0x11] sm:$0xff]
      %v308 = vld [vmem:[%s288 + $0x21] sm:$0xff]
      %v309 = vld [vmem:[%s288 + $0x31] sm:$0xff]
      %v310 = vld [vmem:[%s288 + $0x41] sm:$0xff]
      %v311 = vld [vmem:[%s288 + $0x51] sm:$0xff]
      %v312 = vld [vmem:[%s288 + $0x61] sm:$0xff]
      %v313 = vld [vmem:[%s288 + $0x71] sm:$0xff]
      %v314 = vld [vmem:[%s297 + $0x1] sm:$0xff]
      %v315 = vld [vmem:[%s297 + $0x11] sm:$0xff]
      %v316 = vld [vmem:[%s297 + $0x21] sm:$0xff]
      %v317 = vld [vmem:[%s297 + $0x31] sm:$0xff]
      %v318 = vld [vmem:[%s297 + $0x41] sm:$0xff]
      %v319 = vld [vmem:[%s297 + $0x51] sm:$0xff]
      %v320 = vld [vmem:[%s297 + $0x61] sm:$0xff]
      %v321 = vld [vmem:[%s297 + $0x71] sm:$0xff]
      %330 = vrot.lane.b32.xlu0 %v196, 4
      %v331 = vpop.permute.xlu0 %330
      %332 = vrot.lane.b32.xlu0 %v197, 4
      %v333 = vpop.permute.xlu0 %332
      %334 = vrot.lane.b32.xlu0 %v198, 4
      %v335 = vpop.permute.xlu0 %334
      %336 = vrot.lane.b32.xlu0 %v199, 4
      %v337 = vpop.permute.xlu0 %336
      %338 = vrot.lane.b32.xlu0 %v200, 4
      %v339 = vpop.permute.xlu0 %338
      %340 = vrot.lane.b32.xlu0 %v201, 4
      %v341 = vpop.permute.xlu0 %340
      %342 = vrot.lane.b32.xlu0 %v202, 4
      %v343 = vpop.permute.xlu0 %342
      %344 = vrot.lane.b32.xlu0 %v203, 4
      %v345 = vpop.permute.xlu0 %344
      %362 = vrot.lane.b32.xlu0 %v204, 8
      %v363 = vpop.permute.xlu0 %362
      %364 = vrot.lane.b32.xlu0 %v205, 8
      %v365 = vpop.permute.xlu0 %364
      %366 = vrot.lane.b32.xlu0 %v206, 8
      %v367 = vpop.permute.xlu0 %366
      %368 = vrot.lane.b32.xlu0 %v207, 8
      %v369 = vpop.permute.xlu0 %368
      %370 = vrot.lane.b32.xlu0 %v208, 8
      %v371 = vpop.permute.xlu0 %370
      %372 = vrot.lane.b32.xlu0 %v209, 8
      %v373 = vpop.permute.xlu0 %372
      %374 = vrot.lane.b32.xlu0 %v210, 8
      %v375 = vpop.permute.xlu0 %374
      %376 = vrot.lane.b32.xlu0 %v211, 8
      %v377 = vpop.permute.xlu0 %376
      %394 = vrot.lane.b32.xlu0 %v212, 12
      %v395 = vpop.permute.xlu0 %394
      %396 = vrot.lane.b32.xlu0 %v213, 12
      %v397 = vpop.permute.xlu0 %396
      %398 = vrot.lane.b32.xlu0 %v214, 12
      %v399 = vpop.permute.xlu0 %398
      %400 = vrot.lane.b32.xlu0 %v215, 12
      %v401 = vpop.permute.xlu0 %400
      %402 = vrot.lane.b32.xlu0 %v216, 12
      %v403 = vpop.permute.xlu0 %402
      %404 = vrot.lane.b32.xlu0 %v217, 12
      %v405 = vpop.permute.xlu0 %404
      %406 = vrot.lane.b32.xlu0 %v218, 12
      %v407 = vpop.permute.xlu0 %406
      %408 = vrot.lane.b32.xlu0 %v219, 12
      %v409 = vpop.permute.xlu0 %408
      %426 = vrot.lane.b32.xlu0 %v221, 16
      %v427 = vpop.permute.xlu0 %426
      %428 = vrot.lane.b32.xlu0 %v222, 16
      %v429 = vpop.permute.xlu0 %428
      %430 = vrot.lane.b32.xlu0 %v223, 16
      %v431 = vpop.permute.xlu0 %430
      %432 = vrot.lane.b32.xlu0 %v224, 16
      %v433 = vpop.permute.xlu0 %432
      %434 = vrot.lane.b32.xlu0 %v225, 16
      %v435 = vpop.permute.xlu0 %434
      %436 = vrot.lane.b32.xlu0 %v226, 16
      %v437 = vpop.permute.xlu0 %436
      %438 = vrot.lane.b32.xlu0 %v227, 16
      %v439 = vpop.permute.xlu0 %438
      %440 = vrot.lane.b32.xlu0 %v228, 16
      %v441 = vpop.permute.xlu0 %440
      %458 = vrot.lane.b32.xlu0 %v230, 20
      %v459 = vpop.permute.xlu0 %458
      %460 = vrot.lane.b32.xlu0 %v231, 20
      %v461 = vpop.permute.xlu0 %460
      %462 = vrot.lane.b32.xlu0 %v232, 20
      %v463 = vpop.permute.xlu0 %462
      %464 = vrot.lane.b32.xlu0 %v233, 20
      %v465 = vpop.permute.xlu0 %464
      %466 = vrot.lane.b32.xlu0 %v234, 20
      %v467 = vpop.permute.xlu0 %466
      %468 = vrot.lane.b32.xlu0 %v235, 20
      %v469 = vpop.permute.xlu0 %468
      %470 = vrot.lane.b32.xlu0 %v236, 20
      %v471 = vpop.permute.xlu0 %470
      %472 = vrot.lane.b32.xlu0 %v237, 20
      %v473 = vpop.permute.xlu0 %472
      %490 = vrot.lane.b32.xlu0 %v238, 24
      %v491 = vpop.permute.xlu0 %490
      %492 = vrot.lane.b32.xlu0 %v239, 24
      %v493 = vpop.permute.xlu0 %492
      %494 = vrot.lane.b32.xlu0 %v240, 24
      %v495 = vpop.permute.xlu0 %494
      %496 = vrot.lane.b32.xlu0 %v241, 24
      %v497 = vpop.permute.xlu0 %496
      %498 = vrot.lane.b32.xlu0 %v242, 24
      %v499 = vpop.permute.xlu0 %498
      %500 = vrot.lane.b32.xlu0 %v243, 24
      %v501 = vpop.permute.xlu0 %500
      %502 = vrot.lane.b32.xlu0 %v244, 24
      %v503 = vpop.permute.xlu0 %502
      %504 = vrot.lane.b32.xlu0 %v245, 24
      %v505 = vpop.permute.xlu0 %504
      %522 = vrot.lane.b32.xlu0 %v246, 28
      %v523 = vpop.permute.xlu0 %522
      %524 = vrot.lane.b32.xlu0 %v247, 28
      %v525 = vpop.permute.xlu0 %524
      %526 = vrot.lane.b32.xlu0 %v248, 28
      %v527 = vpop.permute.xlu0 %526
      %528 = vrot.lane.b32.xlu0 %v249, 28
      %v529 = vpop.permute.xlu0 %528
      %530 = vrot.lane.b32.xlu0 %v250, 28
      %v531 = vpop.permute.xlu0 %530
      %532 = vrot.lane.b32.xlu0 %v251, 28
      %v533 = vpop.permute.xlu0 %532
      %534 = vrot.lane.b32.xlu0 %v252, 28
      %v535 = vpop.permute.xlu0 %534
      %536 = vrot.lane.b32.xlu0 %v253, 28
      %v537 = vpop.permute.xlu0 %536
      %554 = vrot.lane.b32.xlu0 %v255, 32
      %v555 = vpop.permute.xlu0 %554
      %556 = vrot.lane.b32.xlu0 %v256, 32
      %v557 = vpop.permute.xlu0 %556
      %558 = vrot.lane.b32.xlu0 %v257, 32
      %v559 = vpop.permute.xlu0 %558
      %560 = vrot.lane.b32.xlu0 %v258, 32
      %v561 = vpop.permute.xlu0 %560
      %562 = vrot.lane.b32.xlu0 %v259, 32
      %v563 = vpop.permute.xlu0 %562
      %564 = vrot.lane.b32.xlu0 %v260, 32
      %v565 = vpop.permute.xlu0 %564
      %566 = vrot.lane.b32.xlu0 %v261, 32
      %v567 = vpop.permute.xlu0 %566
      %568 = vrot.lane.b32.xlu0 %v262, 32
      %v569 = vpop.permute.xlu0 %568
      %586 = vrot.lane.b32.xlu0 %v264, 36
      %v587 = vpop.permute.xlu0 %586
      %588 = vrot.lane.b32.xlu0 %v265, 36
      %v589 = vpop.permute.xlu0 %588
      %590 = vrot.lane.b32.xlu0 %v266, 36
      %v591 = vpop.permute.xlu0 %590
      %592 = vrot.lane.b32.xlu0 %v267, 36
      %v593 = vpop.permute.xlu0 %592
      %594 = vrot.lane.b32.xlu0 %v268, 36
      %v595 = vpop.permute.xlu0 %594
      %596 = vrot.lane.b32.xlu0 %v269, 36
      %v597 = vpop.permute.xlu0 %596
      %598 = vrot.lane.b32.xlu0 %v270, 36
      %v599 = vpop.permute.xlu0 %598
      %600 = vrot.lane.b32.xlu0 %v271, 36
      %v601 = vpop.permute.xlu0 %600
      %618 = vrot.lane.b32.xlu0 %v272, 40
      %v619 = vpop.permute.xlu0 %618
      %620 = vrot.lane.b32.xlu0 %v273, 40
      %v621 = vpop.permute.xlu0 %620
      %622 = vrot.lane.b32.xlu0 %v274, 40
      %v623 = vpop.permute.xlu0 %622
      %624 = vrot.lane.b32.xlu0 %v275, 40
      %v625 = vpop.permute.xlu0 %624
      %626 = vrot.lane.b32.xlu0 %v276, 40
      %v627 = vpop.permute.xlu0 %626
      %628 = vrot.lane.b32.xlu0 %v277, 40
      %v629 = vpop.permute.xlu0 %628
      %630 = vrot.lane.b32.xlu0 %v278, 40
      %v631 = vpop.permute.xlu0 %630
      %632 = vrot.lane.b32.xlu0 %v279, 40
      %v633 = vpop.permute.xlu0 %632
      %650 = vrot.lane.b32.xlu0 %v280, 44
      %v651 = vpop.permute.xlu0 %650
      %652 = vrot.lane.b32.xlu0 %v281, 44
      %v653 = vpop.permute.xlu0 %652
      %654 = vrot.lane.b32.xlu0 %v282, 44
      %v655 = vpop.permute.xlu0 %654
      %656 = vrot.lane.b32.xlu0 %v283, 44
      %v657 = vpop.permute.xlu0 %656
      %658 = vrot.lane.b32.xlu0 %v284, 44
      %v659 = vpop.permute.xlu0 %658
      %660 = vrot.lane.b32.xlu0 %v285, 44
      %v661 = vpop.permute.xlu0 %660
      %662 = vrot.lane.b32.xlu0 %v286, 44
      %v663 = vpop.permute.xlu0 %662
      %664 = vrot.lane.b32.xlu0 %v287, 44
      %v665 = vpop.permute.xlu0 %664
      %682 = vrot.lane.b32.xlu0 %v289, 48
      %v683 = vpop.permute.xlu0 %682
      %684 = vrot.lane.b32.xlu0 %v290, 48
      %v685 = vpop.permute.xlu0 %684
      %686 = vrot.lane.b32.xlu0 %v291, 48
      %v687 = vpop.permute.xlu0 %686
      %688 = vrot.lane.b32.xlu0 %v292, 48
      %v689 = vpop.permute.xlu0 %688
      %690 = vrot.lane.b32.xlu0 %v293, 48
      %v691 = vpop.permute.xlu0 %690
      %692 = vrot.lane.b32.xlu0 %v294, 48
      %v693 = vpop.permute.xlu0 %692
      %694 = vrot.lane.b32.xlu0 %v295, 48
      %v695 = vpop.permute.xlu0 %694
      %696 = vrot.lane.b32.xlu0 %v296, 48
      %v697 = vpop.permute.xlu0 %696
      %714 = vrot.lane.b32.xlu0 %v298, 52
      %v715 = vpop.permute.xlu0 %714
      %716 = vrot.lane.b32.xlu0 %v299, 52
      %v717 = vpop.permute.xlu0 %716
      %718 = vrot.lane.b32.xlu0 %v300, 52
      %v719 = vpop.permute.xlu0 %718
      %720 = vrot.lane.b32.xlu0 %v301, 52
      %v721 = vpop.permute.xlu0 %720
      %722 = vrot.lane.b32.xlu0 %v302, 52
      %v723 = vpop.permute.xlu0 %722
      %724 = vrot.lane.b32.xlu0 %v303, 52
      %v725 = vpop.permute.xlu0 %724
      %726 = vrot.lane.b32.xlu0 %v304, 52
      %v727 = vpop.permute.xlu0 %726
      %728 = vrot.lane.b32.xlu0 %v305, 52
      %v729 = vpop.permute.xlu0 %728
      %746 = vrot.lane.b32.xlu0 %v306, 56
      %v747 = vpop.permute.xlu0 %746
      %748 = vrot.lane.b32.xlu0 %v307, 56
      %v749 = vpop.permute.xlu0 %748
      %750 = vrot.lane.b32.xlu0 %v308, 56
      %v751 = vpop.permute.xlu0 %750
      %752 = vrot.lane.b32.xlu0 %v309, 56
      %v753 = vpop.permute.xlu0 %752
      %754 = vrot.lane.b32.xlu0 %v310, 56
      %v755 = vpop.permute.xlu0 %754
      %756 = vrot.lane.b32.xlu0 %v311, 56
      %v757 = vpop.permute.xlu0 %756
      %758 = vrot.lane.b32.xlu0 %v312, 56
      %v759 = vpop.permute.xlu0 %758
      %760 = vrot.lane.b32.xlu0 %v313, 56
      %v761 = vpop.permute.xlu0 %760
      %778 = vrot.lane.b32.xlu0 %v314, 60
      %v779 = vpop.permute.xlu0 %778
      %780 = vrot.lane.b32.xlu0 %v315, 60
      %v781 = vpop.permute.xlu0 %780
      %782 = vrot.lane.b32.xlu0 %v316, 60
      %v783 = vpop.permute.xlu0 %782
      %784 = vrot.lane.b32.xlu0 %v317, 60
      %v785 = vpop.permute.xlu0 %784
      %786 = vrot.lane.b32.xlu0 %v318, 60
      %v787 = vpop.permute.xlu0 %786
      %788 = vrot.lane.b32.xlu0 %v319, 60
      %v789 = vpop.permute.xlu0 %788
      %790 = vrot.lane.b32.xlu0 %v320, 60
      %v791 = vpop.permute.xlu0 %790
      %792 = vrot.lane.b32.xlu0 %v321, 60
      %v793 = vpop.permute.xlu0 %792
      %vm802 = vcmask 31744
      %v803 = vsel %vm802, %v187, %v331
      %v804 = vsel %vm802, %v188, %v333
      %v805 = vsel %vm802, %v189, %v335
      %v806 = vsel %vm802, %v190, %v337
      %v807 = vsel %vm802, %v191, %v339
      %v808 = vsel %vm802, %v192, %v341
      %v809 = vsel %vm802, %v193, %v343
      %v810 = vsel %vm802, %v194, %v345
      %vm811 = vcmask 64512
      %v812 = vsel %vm811, %v803, %v363
      %v813 = vsel %vm811, %v804, %v365
      %v814 = vsel %vm811, %v805, %v367
      %v815 = vsel %vm811, %v806, %v369
      %v816 = vsel %vm811, %v807, %v371
      %v817 = vsel %vm811, %v808, %v373
      %v818 = vsel %vm811, %v809, %v375
      %v819 = vsel %vm811, %v810, %v377
      %vm820 = vcmask 97280
      %v821 = vsel %vm820, %v812, %v395
      %v822 = vsel %vm820, %v813, %v397
      %v823 = vsel %vm820, %v814, %v399
      %v824 = vsel %vm820, %v815, %v401
      %v825 = vsel %vm820, %v816, %v403
      %v826 = vsel %vm820, %v817, %v405
      %v827 = vsel %vm820, %v818, %v407
      %v828 = vsel %vm820, %v819, %v409
      %vm829 = vcmask 130048
      %v830 = vsel %vm829, %v821, %v427
      %v831 = vsel %vm829, %v822, %v429
      %v832 = vsel %vm829, %v823, %v431
      %v833 = vsel %vm829, %v824, %v433
      %v834 = vsel %vm829, %v825, %v435
      %v835 = vsel %vm829, %v826, %v437
      %v836 = vsel %vm829, %v827, %v439
      %v837 = vsel %vm829, %v828, %v441
      %vm838 = vcmask 162816
      %v839 = vsel %vm838, %v830, %v459
      %v840 = vsel %vm838, %v831, %v461
      %v841 = vsel %vm838, %v832, %v463
      %v842 = vsel %vm838, %v833, %v465
      %v843 = vsel %vm838, %v834, %v467
      %v844 = vsel %vm838, %v835, %v469
      %v845 = vsel %vm838, %v836, %v471
      %v846 = vsel %vm838, %v837, %v473
      %vm847 = vcmask 195584
      %v848 = vsel %vm847, %v839, %v491
      %v849 = vsel %vm847, %v840, %v493
      %v850 = vsel %vm847, %v841, %v495
      %v851 = vsel %vm847, %v842, %v497
      %v852 = vsel %vm847, %v843, %v499
      %v853 = vsel %vm847, %v844, %v501
      %v854 = vsel %vm847, %v845, %v503
      %v855 = vsel %vm847, %v846, %v505
      %vm856 = vcmask 228352
      %v857 = vsel %vm856, %v848, %v523
      %v858 = vsel %vm856, %v849, %v525
      %v859 = vsel %vm856, %v850, %v527
      %v860 = vsel %vm856, %v851, %v529
      %v861 = vsel %vm856, %v852, %v531
      %v862 = vsel %vm856, %v853, %v533
      %v863 = vsel %vm856, %v854, %v535
      %v864 = vsel %vm856, %v855, %v537
      %vm865 = vcmask 261120
      %v866 = vsel %vm865, %v857, %v555
      %v867 = vsel %vm865, %v858, %v557
      %v868 = vsel %vm865, %v859, %v559
      %v869 = vsel %vm865, %v860, %v561
      %v870 = vsel %vm865, %v861, %v563
      %v871 = vsel %vm865, %v862, %v565
      %v872 = vsel %vm865, %v863, %v567
      %v873 = vsel %vm865, %v864, %v569
      %vm874 = vcmask 293888
      %v875 = vsel %vm874, %v866, %v587
      %v876 = vsel %vm874, %v867, %v589
      %v877 = vsel %vm874, %v868, %v591
      %v878 = vsel %vm874, %v869, %v593
      %v879 = vsel %vm874, %v870, %v595
      %v880 = vsel %vm874, %v871, %v597
      %v881 = vsel %vm874, %v872, %v599
      %v882 = vsel %vm874, %v873, %v601
      %vm883 = vcmask 326656
      %v884 = vsel %vm883, %v875, %v619
      %v885 = vsel %vm883, %v876, %v621
      %v886 = vsel %vm883, %v877, %v623
      %v887 = vsel %vm883, %v878, %v625
      %v888 = vsel %vm883, %v879, %v627
      %v889 = vsel %vm883, %v880, %v629
      %v890 = vsel %vm883, %v881, %v631
      %v891 = vsel %vm883, %v882, %v633
      %vm892 = vcmask 359424
      %v893 = vsel %vm892, %v884, %v651
      %v894 = vsel %vm892, %v885, %v653
      %v895 = vsel %vm892, %v886, %v655
      %v896 = vsel %vm892, %v887, %v657
      %v897 = vsel %vm892, %v888, %v659
      %v898 = vsel %vm892, %v889, %v661
      %v899 = vsel %vm892, %v890, %v663
      %v900 = vsel %vm892, %v891, %v665
      %vm901 = vcmask 392192
      %v902 = vsel %vm901, %v893, %v683
      %v903 = vsel %vm901, %v894, %v685
      %v904 = vsel %vm901, %v895, %v687
      %v905 = vsel %vm901, %v896, %v689
      %v906 = vsel %vm901, %v897, %v691
      %v907 = vsel %vm901, %v898, %v693
      %v908 = vsel %vm901, %v899, %v695
      %v909 = vsel %vm901, %v900, %v697
      %vm910 = vcmask 424960
      %v911 = vsel %vm910, %v902, %v715
      %v912 = vsel %vm910, %v903, %v717
      %v913 = vsel %vm910, %v904, %v719
      %v914 = vsel %vm910, %v905, %v721
      %v915 = vsel %vm910, %v906, %v723
      %v916 = vsel %vm910, %v907, %v725
      %v917 = vsel %vm910, %v908, %v727
      %v918 = vsel %vm910, %v909, %v729
      %vm919 = vcmask 457728
      %v920 = vsel %vm919, %v911, %v747
      %v921 = vsel %vm919, %v912, %v749
      %v922 = vsel %vm919, %v913, %v751
      %v923 = vsel %vm919, %v914, %v753
      %v924 = vsel %vm919, %v915, %v755
      %v925 = vsel %vm919, %v916, %v757
      %v926 = vsel %vm919, %v917, %v759
      %v927 = vsel %vm919, %v918, %v761
      %vm928 = vcmask 490496
      %v929 = vsel %vm928, %v920, %v779
      %v930 = vsel %vm928, %v921, %v781
      %v931 = vsel %vm928, %v922, %v783
      %v932 = vsel %vm928, %v923, %v785
      %v933 = vsel %vm928, %v924, %v787
      %v934 = vsel %vm928, %v925, %v789
      %v935 = vsel %vm928, %v926, %v791
      %v936 = vsel %vm928, %v927, %v793
      %v937 = vld [vmem:[%s1] sm:$0xff]
      %v938 = vld [vmem:[%s1 + $0x8] sm:$0xff]
      %v939 = vld [vmem:[%s1 + $0x10] sm:$0xff]
      %v940 = vld [vmem:[%s1 + $0x18] sm:$0xff]
      %v941 = vld [vmem:[%s1 + $0x20] sm:$0xff]
      %v942 = vld [vmem:[%s1 + $0x28] sm:$0xff]
      %v943 = vld [vmem:[%s1 + $0x30] sm:$0xff]
      %v944 = vld [vmem:[%s1 + $0x38] sm:$0xff]
      %vm945 = vcmask 523264
      %v947 = vsel %vm945, %v929, 0
      %v950 = vsel %vm945, %v930, 0
      %v953 = vsel %vm945, %v931, 0
      %v956 = vsel %vm945, %v932, 0
      %v959 = vsel %vm945, %v933, 0
      %v962 = vsel %vm945, %v934, 0
      %v965 = vsel %vm945, %v935, 0
      %v968 = vsel %vm945, %v936, 0
      %970 = vmatprep.subr.mxu0 0.0
      %971 = vmatpush1.msra.mxu0 0.0
      %972 = vmatprep.subr.mxu0 0.0
      %973 = vmatpush1.msra.mxu0 0.0
      %974 = vmatprep.subr.mxu0 0.0
      %975 = vmatpush1.msra.mxu0 0.0
      %976 = vmatprep.subr.mxu0 0.0
      %977 = vmatpush1.msra.mxu0 0.0
      %978 = vmatprep.subr.mxu0 0.0
      %979 = vmatpush1.msra.mxu0 0.0
      %980 = vmatprep.subr.mxu0 0.0
      %981 = vmatpush1.msra.mxu0 0.0
      %982 = vmatprep.subr.mxu0 0.0
      %983 = vmatpush1.msra.mxu0 0.0
      %984 = vmatprep.subr.mxu0 0.0
      %985 = vmatpush1.msra.mxu0 0.0
      %986 = vmatprep.subr.mxu0 0.0
      %987 = vmatpush1.msra.mxu0 %v944
      %988 = vmatprep.subr.mxu0 0.0
      %989 = vmatpush1.msra.mxu0 %v943
      %990 = vmatprep.subr.mxu0 0.0
      %991 = vmatpush1.msra.mxu0 %v942
      %992 = vmatprep.subr.mxu0 0.0
      %993 = vmatpush1.msra.mxu0 %v941
      %994 = vmatprep.subr.mxu0 0.0
      %995 = vmatpush1.msra.mxu0 %v940
      %996 = vmatprep.subr.mxu0 0.0
      %997 = vmatpush1.msra.mxu0 %v939
      %998 = vmatprep.subr.mxu0 0.0
      %999 = vmatpush1.msra.mxu0 %v938
      %1000 = vmatprep.subr.mxu0 0.0
      %1001 = vmatpush1.msra.mxu0 %v937
      %1002 = vmatprep.subr.mxu0 0.0
      %1003 = vmatpush2.msra.mxu0 0.0
      %1004 = vmatprep.subr.mxu0 0.0
      %1005 = vmatpush2.msra.mxu0 0.0
      %1006 = vmatprep.subr.mxu0 0.0
      %1007 = vmatpush2.msra.mxu0 0.0
      %1008 = vmatprep.subr.mxu0 0.0
      %1009 = vmatpush2.msra.mxu0 0.0
      %1010 = vmatprep.subr.mxu0 0.0
      %1011 = vmatpush2.msra.mxu0 0.0
      %1012 = vmatprep.subr.mxu0 0.0
      %1013 = vmatpush2.msra.mxu0 0.0
      %1014 = vmatprep.subr.mxu0 0.0
      %1015 = vmatpush2.msra.mxu0 0.0
      %1016 = vmatprep.subr.mxu0 0.0
      %1017 = vmatpush2.msra.mxu0 0.0
      %1018 = vmatprep.subr.mxu0 0.0
      %1019 = vmatpush2.msra.mxu0 0.0
      %1020 = vmatprep.subr.mxu0 0.0
      %1021 = vmatpush2.msra.mxu0 0.0
      %1022 = vmatprep.subr.mxu0 0.0
      %1023 = vmatpush2.msra.mxu0 0.0
      %1024 = vmatprep.subr.mxu0 0.0
      %1025 = vmatpush2.msra.mxu0 0.0
      %1026 = vmatprep.subr.mxu0 0.0
      %1027 = vmatpush2.msra.mxu0 0.0
      %1028 = vmatprep.subr.mxu0 0.0
      %1029 = vmatpush2.msra.mxu0 0.0
      %1030 = vmatprep.subr.mxu0 0.0
      %1031 = vmatpush2.msra.mxu0 0.0
      %1032 = vmatprep.subr.mxu0 0.0
      %1033 = vmatpush2.msra.mxu0 0.0
      %1034 = vmatprep.mubr.f32.mxu0 0.0
      %1035 = vmatmul.mubr.f32.gmra.mxu0 %v947
      %v1036 = vpop.f32.mrf.mxu0
      %v1037 = vadd.f32 0.0, %v1036
      %v1038 = vpop.f32.mrf.mxu0
      %1039 = vmatprep.mubr.f32.mxu0 0.0
      %1040 = vmatmul.mubr.f32.gmra.mxu0 %v950
      %v1041 = vpop.f32.mrf.mxu0
      %v1042 = vadd.f32 0.0, %v1041
      %v1043 = vpop.f32.mrf.mxu0
      %1044 = vmatprep.mubr.f32.mxu0 0.0
      %1045 = vmatmul.mubr.f32.gmra.mxu0 %v953
      %v1046 = vpop.f32.mrf.mxu0
      %v1047 = vadd.f32 0.0, %v1046
      %v1048 = vpop.f32.mrf.mxu0
      %1049 = vmatprep.mubr.f32.mxu0 0.0
      %1050 = vmatmul.mubr.f32.gmra.mxu0 %v956
      %v1051 = vpop.f32.mrf.mxu0
      %v1052 = vadd.f32 0.0, %v1051
      %v1053 = vpop.f32.mrf.mxu0
      %1054 = vmatprep.mubr.f32.mxu0 0.0
      %1055 = vmatmul.mubr.f32.gmra.mxu0 %v959
      %v1056 = vpop.f32.mrf.mxu0
      %v1057 = vadd.f32 0.0, %v1056
      %v1058 = vpop.f32.mrf.mxu0
      %1059 = vmatprep.mubr.f32.mxu0 0.0
      %1060 = vmatmul.mubr.f32.gmra.mxu0 %v962
      %v1061 = vpop.f32.mrf.mxu0
      %v1062 = vadd.f32 0.0, %v1061
      %v1063 = vpop.f32.mrf.mxu0
      %1064 = vmatprep.mubr.f32.mxu0 0.0
      %1065 = vmatmul.mubr.f32.gmra.mxu0 %v965
      %v1066 = vpop.f32.mrf.mxu0
      %v1067 = vadd.f32 0.0, %v1066
      %v1068 = vpop.f32.mrf.mxu0
      %1069 = vmatprep.mubr.f32.mxu0 0.0
      %1070 = vmatmul.mubr.f32.gmra.mxu0 %v968
      %v1071 = vpop.f32.mrf.mxu0
      %v1072 = vadd.f32 0.0, %v1071
      %v1073 = vpop.f32.mrf.mxu0
      %1074 = vdwg.mxu0
      %1075 = vst.msk [vmem:[%s182] sm:$0xff] %vm811, %v1037
      %1076 = vst.msk [vmem:[%s182 + $0x8] sm:$0xff] %vm811, %v1042
      %1077 = vst.msk [vmem:[%s182 + $0x10] sm:$0xff] %vm811, %v1047
      %1078 = vst.msk [vmem:[%s182 + $0x18] sm:$0xff] %vm811, %v1052
      %1079 = vst.msk [vmem:[%s182 + $0x20] sm:$0xff] %vm811, %v1057
      %1080 = vst.msk [vmem:[%s182 + $0x28] sm:$0xff] %vm811, %v1062
      %1081 = vst.msk [vmem:[%s182 + $0x30] sm:$0xff] %vm811, %v1067
      %1082 = vst.msk [vmem:[%s182 + $0x38] sm:$0xff] %vm811, %v1072
      %v1083 = vsel %vm811, %v1037, 0.0
      %v1084 = vsel %vm811, %v1042, 0.0
      %v1085 = vadd.f32 %v1083, %v1084
      %v1086 = vsel %vm811, %v1047, 0.0
      %v1087 = vadd.f32 %v1085, %v1086
      %v1088 = vsel %vm811, %v1052, 0.0
      %v1089 = vadd.f32 %v1087, %v1088
      %v1090 = vsel %vm811, %v1057, 0.0
      %v1091 = vadd.f32 %v1089, %v1090
      %v1092 = vsel %vm811, %v1062, 0.0
      %v1093 = vadd.f32 %v1091, %v1092
      %v1094 = vsel %vm811, %v1067, 0.0
      %v1095 = vadd.f32 %v1093, %v1094
      %v1096 = vsel %vm811, %v1072, 0.0
      %v1097 = vadd.f32 %v1095, %v1096
      %v1098 = vrot.slane %v1097, 4
      %v1099 = vadd.f32 %v1097, %v1098
      %v1100 = vrot.slane %v1099, 2
      %v1101 = vadd.f32 %v1099, %v1100
      %v1102 = vrot.slane %v1101, 1
      %v1103 = vadd.f32 %v1101, %v1102
      %v1104 = vmul.f32 %v1037, %v1037
      %v1105 = vmul.f32 %v1042, %v1042
      %v1106 = vmul.f32 %v1047, %v1047
      %v1107 = vmul.f32 %v1052, %v1052
      %v1108 = vmul.f32 %v1057, %v1057
      %v1109 = vmul.f32 %v1062, %v1062
      %v1110 = vmul.f32 %v1067, %v1067
      %v1111 = vmul.f32 %v1072, %v1072
      %v1112 = vsel %vm811, %v1104, 0.0
      %v1113 = vsel %vm811, %v1105, 0.0
      %v1114 = vadd.f32 %v1112, %v1113
      %v1115 = vsel %vm811, %v1106, 0.0
      %v1116 = vadd.f32 %v1114, %v1115
      %v1117 = vsel %vm811, %v1107, 0.0
      %v1118 = vadd.f32 %v1116, %v1117
      %v1119 = vsel %vm811, %v1108, 0.0
      %v1120 = vadd.f32 %v1118, %v1119
      %v1121 = vsel %vm811, %v1109, 0.0
      %v1122 = vadd.f32 %v1120, %v1121
      %v1123 = vsel %vm811, %v1110, 0.0
      %v1124 = vadd.f32 %v1122, %v1123
      %v1125 = vsel %vm811, %v1111, 0.0
      %v1126 = vadd.f32 %v1124, %v1125
      %v1127 = vrot.slane %v1126, 4
      %v1128 = vadd.f32 %v1126, %v1127
      %v1129 = vrot.slane %v1128, 2
      %v1130 = vadd.f32 %v1128, %v1129
      %v1131 = vrot.slane %v1130, 1
      %v1132 = vadd.f32 %v1130, %v1131
      %vm1133 = vcmask 1040384
      %v1134 = vsel %vm1133, %v1103, %v1132
      %vm1135 = vcmask 58368
      %1136 = vst.msk [vmem:[%s186] sm:$0x3] %vm1135, %v1134
      %p1137 = scmp.lt.s32.totalorder %s15, 1
      %s1138 = scalar_select %p1137, %s15, 1
      %s1139 = smul.addr %s1138, 8
      %s1140 = smul.addr %s1139, 8
      %s1141 = scalar_lea.vmem %s2, %s1140
      %p1142 = scmp.lt.s32.totalorder %s15, 1
      %s1143 = scalar_select %p1142, %s15, 1
      %s1144 = smul.addr %s1143, 2
      %s1145 = scalar_lea.vmem %s3, %s1144
      // Predicated region
      $region29: #{_vae_encoder_forward.3} parent=27 // pred_check
        %p1146 = pneg %p80
      $region30: #{_vae_encoder_forward.3} parent=27 // pred_check_branch
        %1148 = sbr.rel (%p1146) target = $region32
      $region31: #{_vae_encoder_forward.3} parent=27 // pred_region
        _
      $region32: #{_vae_encoder_forward.3} parent=27 // pred_fallthru
        _
      // Predicated region
      $region33: #{_vae_encoder_forward.3} parent=27 // pred_check
        %p1149 = pneg %p106
      $region34: #{_vae_encoder_forward.3} parent=27 // pred_check_branch
        %1151 = sbr.rel (%p1149) target = $region36
      $region35: #{_vae_encoder_forward.3} parent=27 // pred_region
        _
      $region36: #{_vae_encoder_forward.3} parent=27 // pred_fallthru
        _
    $region28: #{_vae_encoder_forward.3} parent=5 // pred_fallthru
      _
    %p1152 = scmp.le.s32.totalorder 2, %s10
    // Predicated region
    $region37: #{_vae_encoder_forward.3} parent=5 // pred_check
      %p1153 = pneg %p1152
    $region38: #{_vae_encoder_forward.3} parent=5 // pred_check_branch
      %1155 = sbr.rel (%p1153) target = $region40
    $region39: #{_vae_encoder_forward.3} parent=5 // pred_region
      %s1156 = ssub.s32 %s10, 2
      // Predicated region
      $region41: #{_vae_encoder_forward.3} parent=39 // pred_check
        %p1157 = pneg %p86
      $region42: #{_vae_encoder_forward.3} parent=39 // pred_check_branch
        %1159 = sbr.rel (%p1157) target = $region44
      $region43: #{_vae_encoder_forward.3} parent=39 // pred_region
        %p1160 = scmp.lt.s32.totalorder %s16, 1
        %s1161 = scalar_select %p1160, %s16, 1
        %s1162 = smul.addr %s1161, 8
        %s1163 = smul.addr %s1162, 8
        %s1164 = scalar_lea.vmem %s2, %s1163
      $region44: #{_vae_encoder_forward.3} parent=39 // pred_fallthru
        _
      // Predicated region
      $region45: #{_vae_encoder_forward.3} parent=39 // pred_check
        %p1165 = pneg %p112
      $region46: #{_vae_encoder_forward.3} parent=39 // pred_check_branch
        %1167 = sbr.rel (%p1165) target = $region48
      $region47: #{_vae_encoder_forward.3} parent=39 // pred_region
        %p1168 = scmp.lt.s32.totalorder %s16, 1
        %s1169 = scalar_select %p1168, %s16, 1
        %s1170 = smul.addr %s1169, 2
        %s1171 = scalar_lea.vmem %s3, %s1170
      $region48: #{_vae_encoder_forward.3} parent=39 // pred_fallthru
        _
    $region40: #{_vae_encoder_forward.3} parent=5 // pred_fallthru
      _
  $region6: #{_vae_encoder_forward.3} parent=0 // loop_footer
    %s14 = sadd.s32 1, %s10
  $region7: #{_vae_encoder_forward.3} parent=0 // loop_footer_branch
    %9 = sbr.rel target = $region3
  $region8: #{_vae_encoder_forward.3} parent=0 // loop_exit
    _

// kernel: _vae_encoder_forward.5
$region0: #{_vae_encoder_forward.5}
  #allocation0 [shape = 'u32[]', space=smem, size = 0x4, offset = 0x4, fixed_abs, tag = 'smem constant byte address 0x4 - core index']
  #allocation1 [shape = 'u32[144,128]{1,0:T(1,128)}', space=vmem, size = 0x12000, scoped, tag = 'internal scratch']
  %s0 = inlined_call_operand.vmem [shape: f32[2,256], index: 0, kind: input, shape index: {}]
  %s1 = inlined_call_operand.vmem [shape: f32[1,256], index: 1, kind: input, shape index: {}]
  %s2 = inlined_call_operand.vmem [shape: f32[1,256], index: 2, kind: input, shape index: {}]
  %s3 = inlined_call_operand.vmem [shape: f32[256,32], index: 3, kind: input, shape index: {}]
  %s4 = inlined_call_operand.vmem [shape: f32[1,32], index: 4, kind: input, shape index: {}]
  %s5 = inlined_call_operand.vmem [shape: f32[32,16], index: 5, kind: input, shape index: {}]
  %s6 = inlined_call_operand.vmem [shape: f32[1,16], index: 6, kind: input, shape index: {}]
  %s7 = inlined_call_operand.vmem [shape: f32[2,16], index: 7, kind: output, shape index: {}]
  %s8 = sld [smem:[#allocation0]]
  $region38: #{_vae_encoder_forward.5} parent=0
    _
  %s10 = ssub.s32 1, %s8
  %s11 = scalar_select 0, %s10, %s8
  // Predicated region
  $region2: #{_vae_encoder_forward.5} parent=0 // pred_check
    _
  $region3: #{_vae_encoder_forward.5} parent=0 // pred_check_branch
    %13 = sbr.rel (0) target = $region5
  $region4: #{_vae_encoder_forward.5} parent=0 // pred_region
    _
  $region5: #{_vae_encoder_forward.5} parent=0 // pred_fallthru
    _
  // Predicated region
  $region6: #{_vae_encoder_forward.5} parent=0 // pred_check
    _
  $region7: #{_vae_encoder_forward.5} parent=0 // pred_check_branch
    %15 = sbr.rel (0) target = $region9
  $region8: #{_vae_encoder_forward.5} parent=0 // pred_region
    _
  $region9: #{_vae_encoder_forward.5} parent=0 // pred_fallthru
    _
  // Predicated region
  $region10: #{_vae_encoder_forward.5} parent=0 // pred_check
    _
  $region11: #{_vae_encoder_forward.5} parent=0 // pred_check_branch
    %17 = sbr.rel (0) target = $region13
  $region12: #{_vae_encoder_forward.5} parent=0 // pred_region
    _
  $region13: #{_vae_encoder_forward.5} parent=0 // pred_fallthru
    _
  // Predicated region
  $region14: #{_vae_encoder_forward.5} parent=0 // pred_check
    _
  $region15: #{_vae_encoder_forward.5} parent=0 // pred_check_branch
    %19 = sbr.rel (0) target = $region17
  $region16: #{_vae_encoder_forward.5} parent=0 // pred_region
    _
  $region17: #{_vae_encoder_forward.5} parent=0 // pred_fallthru
    _
  // Predicated region
  $region18: #{_vae_encoder_forward.5} parent=0 // pred_check
    _
  $region19: #{_vae_encoder_forward.5} parent=0 // pred_check_branch
    %21 = sbr.rel (0) target = $region21
  $region20: #{_vae_encoder_forward.5} parent=0 // pred_region
    _
  $region21: #{_vae_encoder_forward.5} parent=0 // pred_fallthru
    _
  // Predicated region
  $region22: #{_vae_encoder_forward.5} parent=0 // pred_check
    _
  $region23: #{_vae_encoder_forward.5} parent=0 // pred_check_branch
    %23 = sbr.rel (0) target = $region25
  $region24: #{_vae_encoder_forward.5} parent=0 // pred_region
    _
  $region25: #{_vae_encoder_forward.5} parent=0 // pred_fallthru
    _
  // Predicated region
  $region26: #{_vae_encoder_forward.5} parent=0 // pred_check
    _
  $region27: #{_vae_encoder_forward.5} parent=0 // pred_check_branch
    %25 = sbr.rel (0) target = $region29
  $region28: #{_vae_encoder_forward.5} parent=0 // pred_region
    _
  $region29: #{_vae_encoder_forward.5} parent=0 // pred_fallthru
    _
  %v26 = vld [vmem:[%s0] sm:$0xf]
  %v27 = vld [vmem:[%s1] sm:$0x3]
  %v29 = vlaneseq
  %v30 = vshrl.u32 %v29, 7
  %v31 = vsub.s32 0, %v30
  %v32 = vrot.slane %v27, %v31
  %v33 = vlaneseq
  %v34 = vshrl.u32 %v33, 7
  %v35 = vsub.s32 1, %v34
  %v36 = vrot.slane %v27, %v35
  %v37 = vcombine.low %v32, %v36
  %v39 = vunpack.c.l.s4 1983009808
  %v40 = vunpack.c.0.s8 %v39
  %v41 = vlaneseq
  %v42 = vshrl.u32 %v41, 7
  %v43 = vsub.s32 %v40, %v42
  %v44 = vrot.slane %v37, %v43
  %v46 = vmul.f32 %v26, %v44
  %v47 = vld [vmem:[%s2] sm:$0x3]
  %v49 = vlaneseq
  %v50 = vshrl.u32 %v49, 7
  %v51 = vsub.s32 0, %v50
  %v52 = vrot.slane %v47, %v51
  %v53 = vlaneseq
  %v54 = vshrl.u32 %v53, 7
  %v55 = vsub.s32 1, %v54
  %v56 = vrot.slane %v47, %v55
  %v57 = vcombine.low %v52, %v56
  %v59 = vunpack.c.l.s4 1983009808
  %v60 = vunpack.c.0.s8 %v59
  %v61 = vlaneseq
  %v62 = vshrl.u32 %v61, 7
  %v63 = vsub.s32 %v60, %v62
  %v64 = vrot.slane %v57, %v63
  %v66 = vadd.f32 %v46, %v64
  %v67 = vmax.f32 %v66, 0.0
  %v68 = vld [vmem:[%s3] sm:$0xff]
  %v69 = vld [vmem:[%s3 + $0x8] sm:$0xff]
  %v70 = vld [vmem:[%s3 + $0x10] sm:$0xff]
  %v71 = vld [vmem:[%s3 + $0x18] sm:$0xff]
  %v72 = vld [vmem:[%s3 + $0x20] sm:$0xff]
  %v73 = vld [vmem:[%s3 + $0x28] sm:$0xff]
  %v74 = vld [vmem:[%s3 + $0x30] sm:$0xff]
  %v75 = vld [vmem:[%s3 + $0x38] sm:$0xff]
  %v76 = vld [vmem:[%s3 + $0x40] sm:$0xff]
  %v77 = vld [vmem:[%s3 + $0x48] sm:$0xff]
  %v78 = vld [vmem:[%s3 + $0x50] sm:$0xff]
  %v79 = vld [vmem:[%s3 + $0x58] sm:$0xff]
  %v80 = vld [vmem:[%s3 + $0x60] sm:$0xff]
  %v81 = vld [vmem:[%s3 + $0x68] sm:$0xff]
  %v82 = vld [vmem:[%s3 + $0x70] sm:$0xff]
  %v83 = vld [vmem:[%s3 + $0x78] sm:$0xff]
  %v84 = vld [vmem:[%s3 + $0x80] sm:$0xff]
  %v85 = vld [vmem:[%s3 + $0x88] sm:$0xff]
  %v86 = vld [vmem:[%s3 + $0x90] sm:$0xff]
  %v87 = vld [vmem:[%s3 + $0x98] sm:$0xff]
  %v88 = vld [vmem:[%s3 + $0xa0] sm:$0xff]
  %v89 = vld [vmem:[%s3 + $0xa8] sm:$0xff]
  %v90 = vld [vmem:[%s3 + $0xb0] sm:$0xff]
  %v91 = vld [vmem:[%s3 + $0xb8] sm:$0xff]
  %v92 = vld [vmem:[%s3 + $0xc0] sm:$0xff]
  %v93 = vld [vmem:[%s3 + $0xc8] sm:$0xff]
  %v94 = vld [vmem:[%s3 + $0xd0] sm:$0xff]
  %v95 = vld [vmem:[%s3 + $0xd8] sm:$0xff]
  %v96 = vld [vmem:[%s3 + $0xe0] sm:$0xff]
  %v97 = vld [vmem:[%s3 + $0xe8] sm:$0xff]
  %v98 = vld [vmem:[%s3 + $0xf0] sm:$0xff]
  %v99 = vld [vmem:[%s3 + $0xf8] sm:$0xff]
  %v100 = vld [vmem:[%s4] sm:$0x1]
  %v102 = vlaneseq
  %v103 = vshrl.u32 %v102, 7
  %v104 = vsub.s32 0, %v103
  %v105 = vrot.slane %v100, %v104
  %v109 = vunpack.c.l.s4 1983009808
  %v110 = vunpack.c.0.s8 %v109
  %v111 = vlaneseq
  %v112 = vshrl.u32 %v111, 7
  %v113 = vsub.s32 %v110, %v112
  %v114 = vrot.slane %v67, %v113
  %v115 = vcombine.high %v114, %v114
  %118 = vmatprep.subr.mxu0 0.0
  %119 = vmatpush1.msra.mxu0 %v83
  %120 = vmatprep.subr.mxu0 0.0
  %121 = vmatpush1.msra.mxu0 %v82
  %122 = vmatprep.subr.mxu0 0.0
  %123 = vmatpush1.msra.mxu0 %v81
  %124 = vmatprep.subr.mxu0 0.0
  %125 = vmatpush1.msra.mxu0 %v80
  %126 = vmatprep.subr.mxu0 0.0
  %127 = vmatpush1.msra.mxu0 %v79
  %128 = vmatprep.subr.mxu0 0.0
  %129 = vmatpush1.msra.mxu0 %v78
  %130 = vmatprep.subr.mxu0 0.0
  %131 = vmatpush1.msra.mxu0 %v77
  %132 = vmatprep.subr.mxu0 0.0
  %133 = vmatpush1.msra.mxu0 %v76
  %134 = vmatprep.subr.mxu0 0.0
  %135 = vmatpush1.msra.mxu0 %v75
  %136 = vmatprep.subr.mxu0 0.0
  %137 = vmatpush1.msra.mxu0 %v74
  %138 = vmatprep.subr.mxu0 0.0
  %139 = vmatpush1.msra.mxu0 %v73
  %140 = vmatprep.subr.mxu0 0.0
  %141 = vmatpush1.msra.mxu0 %v72
  %142 = vmatprep.subr.mxu0 0.0
  %143 = vmatpush1.msra.mxu0 %v71
  %144 = vmatprep.subr.mxu0 0.0
  %145 = vmatpush1.msra.mxu0 %v70
  %146 = vmatprep.subr.mxu0 0.0
  %147 = vmatpush1.msra.mxu0 %v69
  %148 = vmatprep.subr.mxu0 0.0
  %149 = vmatpush1.msra.mxu0 %v68
  %150 = vmatprep.subr.mxu0 0.0
  %151 = vmatpush2.msra.mxu0 %v99
  %152 = vmatprep.subr.mxu0 0.0
  %153 = vmatpush2.msra.mxu0 %v98
  %154 = vmatprep.subr.mxu0 0.0
  %155 = vmatpush2.msra.mxu0 %v97
  %156 = vmatprep.subr.mxu0 0.0
  %157 = vmatpush2.msra.mxu0 %v96
  %158 = vmatprep.subr.mxu0 0.0
  %159 = vmatpush2.msra.mxu0 %v95
  %160 = vmatprep.subr.mxu0 0.0
  %161 = vmatpush2.msra.mxu0 %v94
  %162 = vmatprep.subr.mxu0 0.0
  %163 = vmatpush2.msra.mxu0 %v93
  %164 = vmatprep.subr.mxu0 0.0
  %165 = vmatpush2.msra.mxu0 %v92
  %166 = vmatprep.subr.mxu0 0.0
  %167 = vmatpush2.msra.mxu0 %v91
  %168 = vmatprep.subr.mxu0 0.0
  %169 = vmatpush2.msra.mxu0 %v90
  %170 = vmatprep.subr.mxu0 0.0
  %171 = vmatpush2.msra.mxu0 %v89
  %172 = vmatprep.subr.mxu0 0.0
  %173 = vmatpush2.msra.mxu0 %v88
  %174 = vmatprep.subr.mxu0 0.0
  %175 = vmatpush2.msra.mxu0 %v87
  %176 = vmatprep.subr.mxu0 0.0
  %177 = vmatpush2.msra.mxu0 %v86
  %178 = vmatprep.subr.mxu0 0.0
  %179 = vmatpush2.msra.mxu0 %v85
  %180 = vmatprep.subr.mxu0 0.0
  %181 = vmatpush2.msra.mxu0 %v84
  %182 = vmatprep.mubr.f32.mxu0 %v115
  %183 = vmatmul.mubr.f32.gmra.mxu0 %v114
  %v184 = vpop.f32.mrf.mxu0
  %v185 = vadd.f32 %v105, %v184
  %v186 = vpop.f32.mrf.mxu0
  %187 = vdwg.mxu0
  %v188 = vmax.f32 %v185, 0.0
  %v189 = vld [vmem:[%s5] sm:$0xff]
  %v190 = vld [vmem:[%s5 + $0x8] sm:$0xff]
  %v191 = vld [vmem:[%s5 + $0x10] sm:$0xff]
  %v192 = vld [vmem:[%s5 + $0x18] sm:$0xff]
  %v193 = vld [vmem:[%s6] sm:$0x1]
  %v195 = vlaneseq
  %v196 = vshrl.u32 %v195, 7
  %v197 = vsub.s32 0, %v196
  %v198 = vrot.slane %v193, %v197
  %vm200 = vcmask 261120
  %v202 = vsel %vm200, %v188, 0
  %204 = vmatprep.subr.mxu0 0.0
  %205 = vmatpush1.msra.mxu0 0.0
  %206 = vmatprep.subr.mxu0 0.0
  %207 = vmatpush1.msra.mxu0 0.0
  %208 = vmatprep.subr.mxu0 0.0
  %209 = vmatpush1.msra.mxu0 0.0
  %210 = vmatprep.subr.mxu0 0.0
  %211 = vmatpush1.msra.mxu0 0.0
  %212 = vmatprep.subr.mxu0 0.0
  %213 = vmatpush1.msra.mxu0 0.0
  %214 = vmatprep.subr.mxu0 0.0
  %215 = vmatpush1.msra.mxu0 0.0
  %216 = vmatprep.subr.mxu0 0.0
  %217 = vmatpush1.msra.mxu0 0.0
  %218 = vmatprep.subr.mxu0 0.0
  %219 = vmatpush1.msra.mxu0 0.0
  %220 = vmatprep.subr.mxu0 0.0
  %221 = vmatpush1.msra.mxu0 0.0
  %222 = vmatprep.subr.mxu0 0.0
  %223 = vmatpush1.msra.mxu0 0.0
  %224 = vmatprep.subr.mxu0 0.0
  %225 = vmatpush1.msra.mxu0 0.0
  %226 = vmatprep.subr.mxu0 0.0
  %227 = vmatpush1.msra.mxu0 0.0
  %228 = vmatprep.subr.mxu0 0.0
  %229 = vmatpush1.msra.mxu0 %v192
  %230 = vmatprep.subr.mxu0 0.0
  %231 = vmatpush1.msra.mxu0 %v191
  %232 = vmatprep.subr.mxu0 0.0
  %233 = vmatpush1.msra.mxu0 %v190
  %234 = vmatprep.subr.mxu0 0.0
  %235 = vmatpush1.msra.mxu0 %v189
  %236 = vmatprep.subr.mxu0 0.0
  %237 = vmatpush2.msra.mxu0 0.0
  %238 = vmatprep.subr.mxu0 0.0
  %239 = vmatpush2.msra.mxu0 0.0
  %240 = vmatprep.subr.mxu0 0.0
  %241 = vmatpush2.msra.mxu0 0.0
  %242 = vmatprep.subr.mxu0 0.0
  %243 = vmatpush2.msra.mxu0 0.0
  %244 = vmatprep.subr.mxu0 0.0
  %245 = vmatpush2.msra.mxu0 0.0
  %246 = vmatprep.subr.mxu0 0.0
  %247 = vmatpush2.msra.mxu0 0.0
  %248 = vmatprep.subr.mxu0 0.0
  %249 = vmatpush2.msra.mxu0 0.0
  %250 = vmatprep.subr.mxu0 0.0
  %251 = vmatpush2.msra.mxu0 0.0
  %252 = vmatprep.subr.mxu0 0.0
  %253 = vmatpush2.msra.mxu0 0.0
  %254 = vmatprep.subr.mxu0 0.0
  %255 = vmatpush2.msra.mxu0 0.0
  %256 = vmatprep.subr.mxu0 0.0
  %257 = vmatpush2.msra.mxu0 0.0
  %258 = vmatprep.subr.mxu0 0.0
  %259 = vmatpush2.msra.mxu0 0.0
  %260 = vmatprep.subr.mxu0 0.0
  %261 = vmatpush2.msra.mxu0 0.0
  %262 = vmatprep.subr.mxu0 0.0
  %263 = vmatpush2.msra.mxu0 0.0
  %264 = vmatprep.subr.mxu0 0.0
  %265 = vmatpush2.msra.mxu0 0.0
  %266 = vmatprep.subr.mxu0 0.0
  %267 = vmatpush2.msra.mxu0 0.0
  %268 = vmatprep.mubr.f32.mxu0 0.0
  %269 = vmatmul.mubr.f32.gmra.mxu0 %v202
  %v270 = vpop.f32.mrf.mxu0
  %v271 = vadd.f32 %v198, %v270
  %v272 = vpop.f32.mrf.mxu0
  %273 = vdwg.mxu0
  %vm274 = vcmask 123904
  %275 = vst.msk [vmem:[%s7] sm:$0x3] %vm274, %v271
  // Predicated region
  $region30: #{_vae_encoder_forward.5} parent=0 // pred_check
    _
  $region31: #{_vae_encoder_forward.5} parent=0 // pred_check_branch
    %277 = sbr.rel (0) target = $region33
  $region32: #{_vae_encoder_forward.5} parent=0 // pred_region
    _
  $region33: #{_vae_encoder_forward.5} parent=0 // pred_fallthru
    _
  // Predicated region
  $region34: #{_vae_encoder_forward.5} parent=0 // pred_check
    _
  $region35: #{_vae_encoder_forward.5} parent=0 // pred_check_branch
    %279 = sbr.rel (0) target = $region37
  $region36: #{_vae_encoder_forward.5} parent=0 // pred_region
    _
  $region37: #{_vae_encoder_forward.5} parent=0 // pred_fallthru
    _

</llo_original>
